<compile_context>
chip_gen: v7x
topology: tpu7x:2x2x1
jax: 0.10.0
libtpu: 0.0.40
codegen_flags: <defaults>
</compile_context>

<pallas_src>
import functools

import jax
import jax.numpy as jnp
import numpy as np
from jax import lax
from jax.experimental import pallas as pl
from jax.experimental.pallas import tpu as pltpu


def _bilstm_kernel(xp_ref, wihT_ref, whhT_ref, b_ref, post_a_ref, post_b_ref,
                   wfcT_ref, bfc_ref, out_ref, xg_ref, hseq_ref):
    T = xp_ref.shape[0]
    H2 = whhT_ref.shape[0]            # 2H  (fwd | bwd)
    H = H2 // 2

    # Input-side gate pre-activations for ALL steps of BOTH directions in one
    # bf16 MXU pass: row s = gates([x[s] | x[T-1-s]]).  Written to VMEM scratch
    # so the per-step slice is a plain load (bounds vreg live ranges).
    xg_ref[...] = (jnp.dot(xp_ref[...], wihT_ref[...],
                           preferred_element_type=jnp.float32) + b_ref[...])

    post_a = post_a_ref[...]          # (1, 8H): 0.5 on sigmoid cols, 1.0 on g cols
    post_b = post_b_ref[...]          # (1, 8H): 0.5 on sigmoid cols, 0.0 on g cols

    h = jnp.zeros((1, 2 * H), jnp.float32)     # [h_fwd | h_bwd]
    c = jnp.zeros((1, 2 * H), jnp.float32)

    # Fully unrolled fused recurrence: step s advances fwd(time s) and
    # bwd(time T-1-s) together with a single (1,2H)x(2H,8H) bf16 matmul.
    # Gate column layout: [i_f, i_b, f_f, f_b, o_f, o_b, g_f, g_b].
    for s in range(T):
        if s == 0:
            z = xg_ref[0:1, :]                         # h == c == 0 at step 0
        else:
            z = xg_ref[s:s + 1, :] + jnp.dot(
                h.astype(jnp.bfloat16), whhT_ref[...],
                preferred_element_type=jnp.float32)    # (1, 8H), prescaled
        # Single EUP launch for all 8 gate blocks: sigmoid via tanh identity.
        t = jnp.tanh(z)
        gates = t * post_a + post_b
        i_g = gates[:, 0:2 * H]
        f_g = gates[:, 2 * H:4 * H]
        o_g = gates[:, 4 * H:6 * H]
        g_g = gates[:, 6 * H:8 * H]
        c = i_g * g_g if s == 0 else f_g * c + i_g * g_g
        h = o_g * jnp.tanh(c)
        # Time-ordered hidden rows -> VMEM scratch (stores are off the h/c chain).
        hseq_ref[s:s + 1, 0:H] = h[:, 0:H]             # fwd hidden for time s
        hseq_ref[T - 1 - s:T - s, H:2 * H] = h[:, H:]  # bwd hidden for time T-1-s

    # Fused fc epilogue: one (T,2H)x(2H,Cpad) matmul + bias, lane-dense output.
    out = (jnp.dot(hseq_ref[...].astype(jnp.bfloat16), wfcT_ref[...],
                   preferred_element_type=jnp.float32) + bfc_ref[...])
    out_ref[...] = out.astype(out_ref.dtype)


def pack_bilstm_params(params):
    """One-time packing of BiLSTM parameters for the Pallas kernel.
    Call once per parameter set (hoisted out of the per-forward-call path)."""
    H = params["whh_f"].shape[1]
    D = params["wih_f"].shape[1]
    C = params["w_fc"].shape[0]
    Cpad = pl.cdiv(C, 128) * 128
    f32, bf16 = jnp.float32, jnp.bfloat16

    def gates(w):                     # torch gate order: i, f, g, o
        return w[0:H], w[H:2 * H], w[2 * H:3 * H], w[3 * H:4 * H]

    # Combined input weights (2D, 8H); columns [i_f,i_b,f_f,f_b,o_f,o_b,g_f,g_b].
    i_f, f_f, g_f, o_f = gates(params["wih_f"])      # each (H, D)
    i_b, f_b, g_b, o_b = gates(params["wih_b"])
    Zd = jnp.zeros((D, H), f32)
    wihT = jnp.concatenate([
        jnp.concatenate([i_f.T, Zd, f_f.T, Zd, o_f.T, Zd, g_f.T, Zd], axis=1),
        jnp.concatenate([Zd, i_b.T, Zd, f_b.T, Zd, o_b.T, Zd, g_b.T], axis=1),
    ], axis=0).astype(f32)                           # (2D, 8H)

    # Combined recurrent weights: block-diagonal (2H, 8H).
    ri_f, rf_f, rg_f, ro_f = gates(params["whh_f"])  # each (H, H)
    ri_b, rf_b, rg_b, ro_b = gates(params["whh_b"])
    Zh = jnp.zeros((H, H), f32)
    whhT = jnp.concatenate([
        jnp.concatenate([ri_f.T, Zh, rf_f.T, Zh, ro_f.T, Zh, rg_f.T, Zh], axis=1),
        jnp.concatenate([Zh, ri_b.T, Zh, rf_b.T, Zh, ro_b.T, Zh, rg_b.T], axis=1),
    ], axis=0).astype(f32)                           # (2H, 8H)

    # Folded biases, same column layout.
    bsum_f = params["bih_f"] + params["bhh_f"]
    bsum_b = params["bih_b"] + params["bhh_b"]
    bi_f, bf_f, bg_f, bo_f = gates(bsum_f)
    bi_b, bf_b, bg_b, bo_b = gates(bsum_b)
    b = jnp.concatenate(
        [bi_f, bi_b, bf_f, bf_b, bo_f, bo_b, bg_f, bg_b])[None, :].astype(f32)

    # Fold the 0.5 tanh-prescale (sigmoid(x)=0.5*tanh(0.5x)+0.5) for the
    # i/f/o columns (0:6H) into weights and bias; g columns (6H:8H) untouched.
    prescale = jnp.concatenate(
        [jnp.full((6 * H,), 0.5, f32), jnp.ones((2 * H,), f32)])[None, :]
    wihT = (wihT * prescale).astype(bf16)
    whhT = (whhT * prescale).astype(bf16)
    b = b * prescale
    post_a = jnp.concatenate(
        [jnp.full((6 * H,), 0.5, f32), jnp.ones((2 * H,), f32)])[None, :]
    post_b = jnp.concatenate(
        [jnp.full((6 * H,), 0.5, f32), jnp.zeros((2 * H,), f32)])[None, :]

    # Fused fc weight (2H, Cpad), lane-dense zero-padded; rows [fwd | bwd].
    wfcT = jnp.zeros((2 * H, Cpad), f32).at[:, :C].set(params["w_fc"].T).astype(bf16)
    bfc = jnp.zeros((1, Cpad), f32).at[0, :C].set(params["b_fc"])

    return {"wihT": wihT, "whhT": whhT, "b": b, "post_a": post_a,
            "post_b": post_b, "wfcT": wfcT, "bfc": bfc}


@functools.partial(jax.jit, static_argnums=(2,))
def bilstm_pallas(x, packed, num_classes):
    T, _ = x.shape
    H = packed["whhT"].shape[0] // 2
    Cpad = packed["wfcT"].shape[1]
    f32 = jnp.float32

    # Paired input: row s = [x[s] | x[T-1-s]]  (the only per-call packing).
    x_pair = jnp.concatenate([x, jnp.flip(x, axis=0)], axis=1).astype(jnp.bfloat16)

    args = (x_pair, packed["wihT"], packed["whhT"], packed["b"],
            packed["post_a"], packed["post_b"], packed["wfcT"], packed["bfc"])
    vmem = pl.BlockSpec(memory_space=pltpu.MemorySpace.VMEM)

    out = pl.pallas_call(
        _bilstm_kernel,
        out_shape=jax.ShapeDtypeStruct((T, Cpad), f32),
        in_specs=[vmem] * len(args),
        out_specs=vmem,
        scratch_shapes=[pltpu.VMEM((T, 8 * H), f32),   # xg: input-side gate preacts
                        pltpu.VMEM((T, 2 * H), f32)],  # hseq: time-ordered hidden
    )(*args)
    return out[:, :num_classes]


# ---------------- pure-JAX reference (mirrors the PyTorch semantics) --------
def _lstm_ref(x, wih, whh, bih, bhh, H):
    def step(carry, xt):
        h, c = carry
        z = xt @ wih.T + bih + h @ whh.T + bhh
        i = jax.nn.sigmoid(z[0 * H:1 * H])
        f = jax.nn.sigmoid(z[1 * H:2 * H])
        g = jnp.tanh(z[2 * H:3 * H])
        o = jax.nn.sigmoid(z[3 * H:4 * H])
        c = f * c + i * g
        h = o * jnp.tanh(c)
        return (h, c), h
    _, hs = lax.scan(step, (jnp.zeros(H), jnp.zeros(H)), x)
    return hs


def bilstm_ref(x, p):
    H = p["whh_f"].shape[1]
    hf = _lstm_ref(x, p["wih_f"], p["whh_f"], p["bih_f"], p["bhh_f"], H)
    hb = _lstm_ref(x[::-1], p["wih_b"], p["whh_b"], p["bih_b"], p["bhh_b"], H)[::-1]
    cat = jnp.concatenate([hf, hb], axis=-1)                     # (T, 2H)
    return cat @ p["w_fc"].T + p["b_fc"]


if __name__ == "__main__":
    # seq_len, input_size, hidden_size, num_classes (2H=128 -> vreg-aligned gates)
    T, D, H, C = 8, 16, 64, 8
    key = jax.random.PRNGKey(0)
    ks = jax.random.split(key, 11)
    u = lambda k, shape: jax.random.uniform(
        k, shape, jnp.float32, minval=-1.0 / np.sqrt(H), maxval=1.0 / np.sqrt(H))

    params = {
        "wih_f": u(ks[0], (4 * H, D)), "whh_f": u(ks[1], (4 * H, H)),
        "bih_f": u(ks[2], (4 * H,)),   "bhh_f": u(ks[3], (4 * H,)),
        "wih_b": u(ks[4], (4 * H, D)), "whh_b": u(ks[5], (4 * H, H)),
        "bih_b": u(ks[6], (4 * H,)),   "bhh_b": u(ks[7], (4 * H,)),
        "w_fc":  u(ks[8], (C, 2 * H)), "b_fc":  u(ks[9], (C,)),
    }
    x = jax.random.normal(ks[10], (T, D), jnp.float32)

    packed = jax.tree.map(jax.block_until_ready, pack_bilstm_params(params))  # once
    out = jax.block_until_ready(bilstm_pallas(x, packed, C))
    ref = jax.block_until_ready(bilstm_ref(x, params))
    # bf16 MXU operands (h, weights) vs. the f32 reference -> loosened tolerance.
    np.testing.assert_allclose(np.asarray(out), np.asarray(ref), rtol=2e-2, atol=2e-2)
    print("KERNEL_OK")
</pallas_src>

<mosaic_0001>
module attributes {stable_mosaic.version = 11 : i64} {
  func.func @_bilstm_kernel(%arg0: memref<8x32xbf16, #tpu.memory_space<vmem>>, %arg1: memref<32x512xbf16, #tpu.memory_space<vmem>>, %arg2: memref<128x512xbf16, #tpu.memory_space<vmem>>, %arg3: memref<1x512xf32, #tpu.memory_space<vmem>>, %arg4: memref<1x512xf32, #tpu.memory_space<vmem>>, %arg5: memref<1x512xf32, #tpu.memory_space<vmem>>, %arg6: memref<128x128xbf16, #tpu.memory_space<vmem>>, %arg7: memref<1x128xf32, #tpu.memory_space<vmem>>, %arg8: memref<8x128xf32, #tpu.memory_space<vmem>>, %arg9: memref<8x512xf32, #tpu.memory_space<vmem>>, %arg10: memref<8x128xf32, #tpu.memory_space<vmem>>) attributes {dimension_semantics = [], scalar_prefetch = 0 : i64, scratch_operands = 2 : i64, tpu.core_type = #tpu.core_type<tc>} {
    %c0 = arith.constant 0 : index
    %c0_0 = arith.constant 0 : index
    %0 = vector.load %arg0[%c0, %c0_0] : memref<8x32xbf16, #tpu.memory_space<vmem>>, vector<8x32xbf16>
    %c0_1 = arith.constant 0 : index
    %c0_2 = arith.constant 0 : index
    %1 = vector.load %arg1[%c0_1, %c0_2] : memref<32x512xbf16, #tpu.memory_space<vmem>>, vector<32x512xbf16>
    %cst = arith.constant dense<0.000000e+00> : vector<8x512xf32>
    %2 = tpu.matmul %0, %1, %cst {dimension_numbers = #tpu.dot_dimension_numbers<[1], [0], [0], [1], [0, 0, 1, 1], [], []>} : vector<8x32xbf16>, vector<32x512xbf16>, vector<8x512xf32> -> vector<8x512xf32>
    %c0_3 = arith.constant 0 : index
    %c0_4 = arith.constant 0 : index
    %3 = vector.load %arg3[%c0_3, %c0_4] : memref<1x512xf32, #tpu.memory_space<vmem>>, vector<1x512xf32>
    %4 = vector.broadcast %3 : vector<1x512xf32> to vector<8x512xf32>
    %5 = arith.addf %2, %4 : vector<8x512xf32>
    %c0_5 = arith.constant 0 : index
    %c0_6 = arith.constant 0 : index
    %6 = vector.load %arg9[%c0_5, %c0_6] : memref<8x512xf32, #tpu.memory_space<vmem>>, vector<8x512xf32>
    tpu.vector_store %arg9[%c0_5, %c0_6], %5 {strides = array<i32>} : memref<8x512xf32, #tpu.memory_space<vmem>>, vector<8x512xf32>,
    %c0_7 = arith.constant 0 : index
    %c0_8 = arith.constant 0 : index
    %7 = vector.load %arg4[%c0_7, %c0_8] : memref<1x512xf32, #tpu.memory_space<vmem>>, vector<1x512xf32>
    %c0_9 = arith.constant 0 : index
    %c0_10 = arith.constant 0 : index
    %8 = vector.load %arg5[%c0_9, %c0_10] : memref<1x512xf32, #tpu.memory_space<vmem>>, vector<1x512xf32>
    %c0_11 = arith.constant 0 : index
    %c0_12 = arith.constant 0 : index
    %9 = vector.load %arg9[%c0_11, %c0_12] : memref<8x512xf32, #tpu.memory_space<vmem>>, vector<1x512xf32>
    %10 = math.tanh %9 : vector<1x512xf32>
    %11 = arith.mulf %10, %7 : vector<1x512xf32>
    %12 = arith.addf %11, %8 : vector<1x512xf32>
    %13 = vector.extract_strided_slice %12 {offsets = [0, 0], sizes = [1, 128], strides = [1, 1]} : vector<1x512xf32> to vector<1x128xf32>
    %14 = vector.extract_strided_slice %12 {offsets = [0, 256], sizes = [1, 128], strides = [1, 1]} : vector<1x512xf32> to vector<1x128xf32>
    %15 = vector.extract_strided_slice %12 {offsets = [0, 384], sizes = [1, 128], strides = [1, 1]} : vector<1x512xf32> to vector<1x128xf32>
    %16 = arith.mulf %13, %15 : vector<1x128xf32>
    %17 = math.tanh %16 : vector<1x128xf32>
    %18 = arith.mulf %14, %17 : vector<1x128xf32>
    %19 = vector.extract_strided_slice %18 {offsets = [0, 0], sizes = [1, 64], strides = [1, 1]} : vector<1x128xf32> to vector<1x64xf32>
    %c0_13 = arith.constant 0 : index
    %c0_14 = arith.constant 0 : index
    %20 = vector.load %arg10[%c0_13, %c0_14] : memref<8x128xf32, #tpu.memory_space<vmem>>, vector<1x64xf32>
    tpu.vector_store %arg10[%c0_13, %c0_14], %19 {strides = array<i32>} : memref<8x128xf32, #tpu.memory_space<vmem>>, vector<1x64xf32>,
    %21 = vector.extract_strided_slice %18 {offsets = [0, 64], sizes = [1, 64], strides = [1, 1]} : vector<1x128xf32> to vector<1x64xf32>
    %c7 = arith.constant 7 : index
    %c64 = arith.constant 64 : index
    %22 = vector.load %arg10[%c7, %c64] : memref<8x128xf32, #tpu.memory_space<vmem>>, vector<1x64xf32>
    tpu.vector_store %arg10[%c7, %c64], %21 {strides = array<i32>} : memref<8x128xf32, #tpu.memory_space<vmem>>, vector<1x64xf32>,
    %c1 = arith.constant 1 : index
    %c0_15 = arith.constant 0 : index
    %23 = vector.load %arg9[%c1, %c0_15] : memref<8x512xf32, #tpu.memory_space<vmem>>, vector<1x512xf32>
    %24 = arith.truncf %18 : vector<1x128xf32> to vector<1x128xbf16>
    %c0_16 = arith.constant 0 : index
    %c0_17 = arith.constant 0 : index
    %25 = vector.load %arg2[%c0_16, %c0_17] : memref<128x512xbf16, #tpu.memory_space<vmem>>, vector<128x512xbf16>
    %cst_18 = arith.constant dense<0.000000e+00> : vector<1x512xf32>
    %26 = tpu.matmul %24, %25, %cst_18 {dimension_numbers = #tpu.dot_dimension_numbers<[1], [0], [0], [1], [0, 0, 1, 1], [], []>} : vector<1x128xbf16>, vector<128x512xbf16>, vector<1x512xf32> -> vector<1x512xf32>
    %27 = arith.addf %23, %26 : vector<1x512xf32>
    %28 = math.tanh %27 : vector<1x512xf32>
    %29 = arith.mulf %28, %7 : vector<1x512xf32>
    %30 = arith.addf %29, %8 : vector<1x512xf32>
    %31 = vector.extract_strided_slice %30 {offsets = [0, 0], sizes = [1, 128], strides = [1, 1]} : vector<1x512xf32> to vector<1x128xf32>
    %32 = vector.extract_strided_slice %30 {offsets = [0, 128], sizes = [1, 128], strides = [1, 1]} : vector<1x512xf32> to vector<1x128xf32>
    %33 = vector.extract_strided_slice %30 {offsets = [0, 256], sizes = [1, 128], strides = [1, 1]} : vector<1x512xf32> to vector<1x128xf32>
    %34 = vector.extract_strided_slice %30 {offsets = [0, 384], sizes = [1, 128], strides = [1, 1]} : vector<1x512xf32> to vector<1x128xf32>
    %35 = arith.mulf %32, %16 : vector<1x128xf32>
    %36 = arith.mulf %31, %34 : vector<1x128xf32>
    %37 = arith.addf %35, %36 : vector<1x128xf32>
    %38 = math.tanh %37 : vector<1x128xf32>
    %39 = arith.mulf %33, %38 : vector<1x128xf32>
    %40 = vector.extract_strided_slice %39 {offsets = [0, 0], sizes = [1, 64], strides = [1, 1]} : vector<1x128xf32> to vector<1x64xf32>
    %c1_19 = arith.constant 1 : index
    %c0_20 = arith.constant 0 : index
    %41 = vector.load %arg10[%c1_19, %c0_20] : memref<8x128xf32, #tpu.memory_space<vmem>>, vector<1x64xf32>
    tpu.vector_store %arg10[%c1_19, %c0_20], %40 {strides = array<i32>} : memref<8x128xf32, #tpu.memory_space<vmem>>, vector<1x64xf32>,
    %42 = vector.extract_strided_slice %39 {offsets = [0, 64], sizes = [1, 64], strides = [1, 1]} : vector<1x128xf32> to vector<1x64xf32>
    %c6 = arith.constant 6 : index
    %c64_21 = arith.constant 64 : index
    %43 = vector.load %arg10[%c6, %c64_21] : memref<8x128xf32, #tpu.memory_space<vmem>>, vector<1x64xf32>
    tpu.vector_store %arg10[%c6, %c64_21], %42 {strides = array<i32>} : memref<8x128xf32, #tpu.memory_space<vmem>>, vector<1x64xf32>,
    %c2 = arith.constant 2 : index
    %c0_22 = arith.constant 0 : index
    %44 = vector.load %arg9[%c2, %c0_22] : memref<8x512xf32, #tpu.memory_space<vmem>>, vector<1x512xf32>
    %45 = arith.truncf %39 : vector<1x128xf32> to vector<1x128xbf16>
    %c0_23 = arith.constant 0 : index
    %c0_24 = arith.constant 0 : index
    %46 = vector.load %arg2[%c0_23, %c0_24] : memref<128x512xbf16, #tpu.memory_space<vmem>>, vector<128x512xbf16>
    %cst_25 = arith.constant dense<0.000000e+00> : vector<1x512xf32>
    %47 = tpu.matmul %45, %46, %cst_25 {dimension_numbers = #tpu.dot_dimension_numbers<[1], [0], [0], [1], [0, 0, 1, 1], [], []>} : vector<1x128xbf16>, vector<128x512xbf16>, vector<1x512xf32> -> vector<1x512xf32>
    %48 = arith.addf %44, %47 : vector<1x512xf32>
    %49 = math.tanh %48 : vector<1x512xf32>
    %50 = arith.mulf %49, %7 : vector<1x512xf32>
    %51 = arith.addf %50, %8 : vector<1x512xf32>
    %52 = vector.extract_strided_slice %51 {offsets = [0, 0], sizes = [1, 128], strides = [1, 1]} : vector<1x512xf32> to vector<1x128xf32>
    %53 = vector.extract_strided_slice %51 {offsets = [0, 128], sizes = [1, 128], strides = [1, 1]} : vector<1x512xf32> to vector<1x128xf32>
    %54 = vector.extract_strided_slice %51 {offsets = [0, 256], sizes = [1, 128], strides = [1, 1]} : vector<1x512xf32> to vector<1x128xf32>
    %55 = vector.extract_strided_slice %51 {offsets = [0, 384], sizes = [1, 128], strides = [1, 1]} : vector<1x512xf32> to vector<1x128xf32>
    %56 = arith.mulf %53, %37 : vector<1x128xf32>
    %57 = arith.mulf %52, %55 : vector<1x128xf32>
    %58 = arith.addf %56, %57 : vector<1x128xf32>
    %59 = math.tanh %58 : vector<1x128xf32>
    %60 = arith.mulf %54, %59 : vector<1x128xf32>
    %61 = vector.extract_strided_slice %60 {offsets = [0, 0], sizes = [1, 64], strides = [1, 1]} : vector<1x128xf32> to vector<1x64xf32>
    %c2_26 = arith.constant 2 : index
    %c0_27 = arith.constant 0 : index
    %62 = vector.load %arg10[%c2_26, %c0_27] : memref<8x128xf32, #tpu.memory_space<vmem>>, vector<1x64xf32>
    tpu.vector_store %arg10[%c2_26, %c0_27], %61 {strides = array<i32>} : memref<8x128xf32, #tpu.memory_space<vmem>>, vector<1x64xf32>,
    %63 = vector.extract_strided_slice %60 {offsets = [0, 64], sizes = [1, 64], strides = [1, 1]} : vector<1x128xf32> to vector<1x64xf32>
    %c5 = arith.constant 5 : index
    %c64_28 = arith.constant 64 : index
    %64 = vector.load %arg10[%c5, %c64_28] : memref<8x128xf32, #tpu.memory_space<vmem>>, vector<1x64xf32>
    tpu.vector_store %arg10[%c5, %c64_28], %63 {strides = array<i32>} : memref<8x128xf32, #tpu.memory_space<vmem>>, vector<1x64xf32>,
    %c3 = arith.constant 3 : index
    %c0_29 = arith.constant 0 : index
    %65 = vector.load %arg9[%c3, %c0_29] : memref<8x512xf32, #tpu.memory_space<vmem>>, vector<1x512xf32>
    %66 = arith.truncf %60 : vector<1x128xf32> to vector<1x128xbf16>
    %c0_30 = arith.constant 0 : index
    %c0_31 = arith.constant 0 : index
    %67 = vector.load %arg2[%c0_30, %c0_31] : memref<128x512xbf16, #tpu.memory_space<vmem>>, vector<128x512xbf16>
    %cst_32 = arith.constant dense<0.000000e+00> : vector<1x512xf32>
    %68 = tpu.matmul %66, %67, %cst_32 {dimension_numbers = #tpu.dot_dimension_numbers<[1], [0], [0], [1], [0, 0, 1, 1], [], []>} : vector<1x128xbf16>, vector<128x512xbf16>, vector<1x512xf32> -> vector<1x512xf32>
    %69 = arith.addf %65, %68 : vector<1x512xf32>
    %70 = math.tanh %69 : vector<1x512xf32>
    %71 = arith.mulf %70, %7 : vector<1x512xf32>
    %72 = arith.addf %71, %8 : vector<1x512xf32>
    %73 = vector.extract_strided_slice %72 {offsets = [0, 0], sizes = [1, 128], strides = [1, 1]} : vector<1x512xf32> to vector<1x128xf32>
    %74 = vector.extract_strided_slice %72 {offsets = [0, 128], sizes = [1, 128], strides = [1, 1]} : vector<1x512xf32> to vector<1x128xf32>
    %75 = vector.extract_strided_slice %72 {offsets = [0, 256], sizes = [1, 128], strides = [1, 1]} : vector<1x512xf32> to vector<1x128xf32>
    %76 = vector.extract_strided_slice %72 {offsets = [0, 384], sizes = [1, 128], strides = [1, 1]} : vector<1x512xf32> to vector<1x128xf32>
    %77 = arith.mulf %74, %58 : vector<1x128xf32>
    %78 = arith.mulf %73, %76 : vector<1x128xf32>
    %79 = arith.addf %77, %78 : vector<1x128xf32>
    %80 = math.tanh %79 : vector<1x128xf32>
    %81 = arith.mulf %75, %80 : vector<1x128xf32>
    %82 = vector.extract_strided_slice %81 {offsets = [0, 0], sizes = [1, 64], strides = [1, 1]} : vector<1x128xf32> to vector<1x64xf32>
    %c3_33 = arith.constant 3 : index
    %c0_34 = arith.constant 0 : index
    %83 = vector.load %arg10[%c3_33, %c0_34] : memref<8x128xf32, #tpu.memory_space<vmem>>, vector<1x64xf32>
    tpu.vector_store %arg10[%c3_33, %c0_34], %82 {strides = array<i32>} : memref<8x128xf32, #tpu.memory_space<vmem>>, vector<1x64xf32>,
    %84 = vector.extract_strided_slice %81 {offsets = [0, 64], sizes = [1, 64], strides = [1, 1]} : vector<1x128xf32> to vector<1x64xf32>
    %c4 = arith.constant 4 : index
    %c64_35 = arith.constant 64 : index
    %85 = vector.load %arg10[%c4, %c64_35] : memref<8x128xf32, #tpu.memory_space<vmem>>, vector<1x64xf32>
    tpu.vector_store %arg10[%c4, %c64_35], %84 {strides = array<i32>} : memref<8x128xf32, #tpu.memory_space<vmem>>, vector<1x64xf32>,
    %c4_36 = arith.constant 4 : index
    %c0_37 = arith.constant 0 : index
    %86 = vector.load %arg9[%c4_36, %c0_37] : memref<8x512xf32, #tpu.memory_space<vmem>>, vector<1x512xf32>
    %87 = arith.truncf %81 : vector<1x128xf32> to vector<1x128xbf16>
    %c0_38 = arith.constant 0 : index
    %c0_39 = arith.constant 0 : index
    %88 = vector.load %arg2[%c0_38, %c0_39] : memref<128x512xbf16, #tpu.memory_space<vmem>>, vector<128x512xbf16>
    %cst_40 = arith.constant dense<0.000000e+00> : vector<1x512xf32>
    %89 = tpu.matmul %87, %88, %cst_40 {dimension_numbers = #tpu.dot_dimension_numbers<[1], [0], [0], [1], [0, 0, 1, 1], [], []>} : vector<1x128xbf16>, vector<128x512xbf16>, vector<1x512xf32> -> vector<1x512xf32>
    %90 = arith.addf %86, %89 : vector<1x512xf32>
    %91 = math.tanh %90 : vector<1x512xf32>
    %92 = arith.mulf %91, %7 : vector<1x512xf32>
    %93 = arith.addf %92, %8 : vector<1x512xf32>
    %94 = vector.extract_strided_slice %93 {offsets = [0, 0], sizes = [1, 128], strides = [1, 1]} : vector<1x512xf32> to vector<1x128xf32>
    %95 = vector.extract_strided_slice %93 {offsets = [0, 128], sizes = [1, 128], strides = [1, 1]} : vector<1x512xf32> to vector<1x128xf32>
    %96 = vector.extract_strided_slice %93 {offsets = [0, 256], sizes = [1, 128], strides = [1, 1]} : vector<1x512xf32> to vector<1x128xf32>
    %97 = vector.extract_strided_slice %93 {offsets = [0, 384], sizes = [1, 128], strides = [1, 1]} : vector<1x512xf32> to vector<1x128xf32>
    %98 = arith.mulf %95, %79 : vector<1x128xf32>
    %99 = arith.mulf %94, %97 : vector<1x128xf32>
    %100 = arith.addf %98, %99 : vector<1x128xf32>
    %101 = math.tanh %100 : vector<1x128xf32>
    %102 = arith.mulf %96, %101 : vector<1x128xf32>
    %103 = vector.extract_strided_slice %102 {offsets = [0, 0], sizes = [1, 64], strides = [1, 1]} : vector<1x128xf32> to vector<1x64xf32>
    %c4_41 = arith.constant 4 : index
    %c0_42 = arith.constant 0 : index
    %104 = vector.load %arg10[%c4_41, %c0_42] : memref<8x128xf32, #tpu.memory_space<vmem>>, vector<1x64xf32>
    tpu.vector_store %arg10[%c4_41, %c0_42], %103 {strides = array<i32>} : memref<8x128xf32, #tpu.memory_space<vmem>>, vector<1x64xf32>,
    %105 = vector.extract_strided_slice %102 {offsets = [0, 64], sizes = [1, 64], strides = [1, 1]} : vector<1x128xf32> to vector<1x64xf32>
    %c3_43 = arith.constant 3 : index
    %c64_44 = arith.constant 64 : index
    %106 = vector.load %arg10[%c3_43, %c64_44] : memref<8x128xf32, #tpu.memory_space<vmem>>, vector<1x64xf32>
    tpu.vector_store %arg10[%c3_43, %c64_44], %105 {strides = array<i32>} : memref<8x128xf32, #tpu.memory_space<vmem>>, vector<1x64xf32>,
    %c5_45 = arith.constant 5 : index
    %c0_46 = arith.constant 0 : index
    %107 = vector.load %arg9[%c5_45, %c0_46] : memref<8x512xf32, #tpu.memory_space<vmem>>, vector<1x512xf32>
    %108 = arith.truncf %102 : vector<1x128xf32> to vector<1x128xbf16>
    %c0_47 = arith.constant 0 : index
    %c0_48 = arith.constant 0 : index
    %109 = vector.load %arg2[%c0_47, %c0_48] : memref<128x512xbf16, #tpu.memory_space<vmem>>, vector<128x512xbf16>
    %cst_49 = arith.constant dense<0.000000e+00> : vector<1x512xf32>
    %110 = tpu.matmul %108, %109, %cst_49 {dimension_numbers = #tpu.dot_dimension_numbers<[1], [0], [0], [1], [0, 0, 1, 1], [], []>} : vector<1x128xbf16>, vector<128x512xbf16>, vector<1x512xf32> -> vector<1x512xf32>
    %111 = arith.addf %107, %110 : vector<1x512xf32>
    %112 = math.tanh %111 : vector<1x512xf32>
    %113 = arith.mulf %112, %7 : vector<1x512xf32>
    %114 = arith.addf %113, %8 : vector<1x512xf32>
    %115 = vector.extract_strided_slice %114 {offsets = [0, 0], sizes = [1, 128], strides = [1, 1]} : vector<1x512xf32> to vector<1x128xf32>
    %116 = vector.extract_strided_slice %114 {offsets = [0, 128], sizes = [1, 128], strides = [1, 1]} : vector<1x512xf32> to vector<1x128xf32>
    %117 = vector.extract_strided_slice %114 {offsets = [0, 256], sizes = [1, 128], strides = [1, 1]} : vector<1x512xf32> to vector<1x128xf32>
    %118 = vector.extract_strided_slice %114 {offsets = [0, 384], sizes = [1, 128], strides = [1, 1]} : vector<1x512xf32> to vector<1x128xf32>
    %119 = arith.mulf %116, %100 : vector<1x128xf32>
    %120 = arith.mulf %115, %118 : vector<1x128xf32>
    %121 = arith.addf %119, %120 : vector<1x128xf32>
    %122 = math.tanh %121 : vector<1x128xf32>
    %123 = arith.mulf %117, %122 : vector<1x128xf32>
    %124 = vector.extract_strided_slice %123 {offsets = [0, 0], sizes = [1, 64], strides = [1, 1]} : vector<1x128xf32> to vector<1x64xf32>
    %c5_50 = arith.constant 5 : index
    %c0_51 = arith.constant 0 : index
    %125 = vector.load %arg10[%c5_50, %c0_51] : memref<8x128xf32, #tpu.memory_space<vmem>>, vector<1x64xf32>
    tpu.vector_store %arg10[%c5_50, %c0_51], %124 {strides = array<i32>} : memref<8x128xf32, #tpu.memory_space<vmem>>, vector<1x64xf32>,
    %126 = vector.extract_strided_slice %123 {offsets = [0, 64], sizes = [1, 64], strides = [1, 1]} : vector<1x128xf32> to vector<1x64xf32>
    %c2_52 = arith.constant 2 : index
    %c64_53 = arith.constant 64 : index
    %127 = vector.load %arg10[%c2_52, %c64_53] : memref<8x128xf32, #tpu.memory_space<vmem>>, vector<1x64xf32>
    tpu.vector_store %arg10[%c2_52, %c64_53], %126 {strides = array<i32>} : memref<8x128xf32, #tpu.memory_space<vmem>>, vector<1x64xf32>,
    %c6_54 = arith.constant 6 : index
    %c0_55 = arith.constant 0 : index
    %128 = vector.load %arg9[%c6_54, %c0_55] : memref<8x512xf32, #tpu.memory_space<vmem>>, vector<1x512xf32>
    %129 = arith.truncf %123 : vector<1x128xf32> to vector<1x128xbf16>
    %c0_56 = arith.constant 0 : index
    %c0_57 = arith.constant 0 : index
    %130 = vector.load %arg2[%c0_56, %c0_57] : memref<128x512xbf16, #tpu.memory_space<vmem>>, vector<128x512xbf16>
    %cst_58 = arith.constant dense<0.000000e+00> : vector<1x512xf32>
    %131 = tpu.matmul %129, %130, %cst_58 {dimension_numbers = #tpu.dot_dimension_numbers<[1], [0], [0], [1], [0, 0, 1, 1], [], []>} : vector<1x128xbf16>, vector<128x512xbf16>, vector<1x512xf32> -> vector<1x512xf32>
    %132 = arith.addf %128, %131 : vector<1x512xf32>
    %133 = math.tanh %132 : vector<1x512xf32>
    %134 = arith.mulf %133, %7 : vector<1x512xf32>
    %135 = arith.addf %134, %8 : vector<1x512xf32>
    %136 = vector.extract_strided_slice %135 {offsets = [0, 0], sizes = [1, 128], strides = [1, 1]} : vector<1x512xf32> to vector<1x128xf32>
    %137 = vector.extract_strided_slice %135 {offsets = [0, 128], sizes = [1, 128], strides = [1, 1]} : vector<1x512xf32> to vector<1x128xf32>
    %138 = vector.extract_strided_slice %135 {offsets = [0, 256], sizes = [1, 128], strides = [1, 1]} : vector<1x512xf32> to vector<1x128xf32>
    %139 = vector.extract_strided_slice %135 {offsets = [0, 384], sizes = [1, 128], strides = [1, 1]} : vector<1x512xf32> to vector<1x128xf32>
    %140 = arith.mulf %137, %121 : vector<1x128xf32>
    %141 = arith.mulf %136, %139 : vector<1x128xf32>
    %142 = arith.addf %140, %141 : vector<1x128xf32>
    %143 = math.tanh %142 : vector<1x128xf32>
    %144 = arith.mulf %138, %143 : vector<1x128xf32>
    %145 = vector.extract_strided_slice %144 {offsets = [0, 0], sizes = [1, 64], strides = [1, 1]} : vector<1x128xf32> to vector<1x64xf32>
    %c6_59 = arith.constant 6 : index
    %c0_60 = arith.constant 0 : index
    %146 = vector.load %arg10[%c6_59, %c0_60] : memref<8x128xf32, #tpu.memory_space<vmem>>, vector<1x64xf32>
    tpu.vector_store %arg10[%c6_59, %c0_60], %145 {strides = array<i32>} : memref<8x128xf32, #tpu.memory_space<vmem>>, vector<1x64xf32>,
    %147 = vector.extract_strided_slice %144 {offsets = [0, 64], sizes = [1, 64], strides = [1, 1]} : vector<1x128xf32> to vector<1x64xf32>
    %c1_61 = arith.constant 1 : index
    %c64_62 = arith.constant 64 : index
    %148 = vector.load %arg10[%c1_61, %c64_62] : memref<8x128xf32, #tpu.memory_space<vmem>>, vector<1x64xf32>
    tpu.vector_store %arg10[%c1_61, %c64_62], %147 {strides = array<i32>} : memref<8x128xf32, #tpu.memory_space<vmem>>, vector<1x64xf32>,
    %c7_63 = arith.constant 7 : index
    %c0_64 = arith.constant 0 : index
    %149 = vector.load %arg9[%c7_63, %c0_64] : memref<8x512xf32, #tpu.memory_space<vmem>>, vector<1x512xf32>
    %150 = arith.truncf %144 : vector<1x128xf32> to vector<1x128xbf16>
    %c0_65 = arith.constant 0 : index
    %c0_66 = arith.constant 0 : index
    %151 = vector.load %arg2[%c0_65, %c0_66] : memref<128x512xbf16, #tpu.memory_space<vmem>>, vector<128x512xbf16>
    %cst_67 = arith.constant dense<0.000000e+00> : vector<1x512xf32>
    %152 = tpu.matmul %150, %151, %cst_67 {dimension_numbers = #tpu.dot_dimension_numbers<[1], [0], [0], [1], [0, 0, 1, 1], [], []>} : vector<1x128xbf16>, vector<128x512xbf16>, vector<1x512xf32> -> vector<1x512xf32>
    %153 = arith.addf %149, %152 : vector<1x512xf32>
    %154 = math.tanh %153 : vector<1x512xf32>
    %155 = arith.mulf %154, %7 : vector<1x512xf32>
    %156 = arith.addf %155, %8 : vector<1x512xf32>
    %157 = vector.extract_strided_slice %156 {offsets = [0, 0], sizes = [1, 128], strides = [1, 1]} : vector<1x512xf32> to vector<1x128xf32>
    %158 = vector.extract_strided_slice %156 {offsets = [0, 128], sizes = [1, 128], strides = [1, 1]} : vector<1x512xf32> to vector<1x128xf32>
    %159 = vector.extract_strided_slice %156 {offsets = [0, 256], sizes = [1, 128], strides = [1, 1]} : vector<1x512xf32> to vector<1x128xf32>
    %160 = vector.extract_strided_slice %156 {offsets = [0, 384], sizes = [1, 128], strides = [1, 1]} : vector<1x512xf32> to vector<1x128xf32>
    %161 = arith.mulf %158, %142 : vector<1x128xf32>
    %162 = arith.mulf %157, %160 : vector<1x128xf32>
    %163 = arith.addf %161, %162 : vector<1x128xf32>
    %164 = math.tanh %163 : vector<1x128xf32>
    %165 = arith.mulf %159, %164 : vector<1x128xf32>
    %166 = vector.extract_strided_slice %165 {offsets = [0, 0], sizes = [1, 64], strides = [1, 1]} : vector<1x128xf32> to vector<1x64xf32>
    %c7_68 = arith.constant 7 : index
    %c0_69 = arith.constant 0 : index
    %167 = vector.load %arg10[%c7_68, %c0_69] : memref<8x128xf32, #tpu.memory_space<vmem>>, vector<1x64xf32>
    tpu.vector_store %arg10[%c7_68, %c0_69], %166 {strides = array<i32>} : memref<8x128xf32, #tpu.memory_space<vmem>>, vector<1x64xf32>,
    %168 = vector.extract_strided_slice %165 {offsets = [0, 64], sizes = [1, 64], strides = [1, 1]} : vector<1x128xf32> to vector<1x64xf32>
    %c0_70 = arith.constant 0 : index
    %c64_71 = arith.constant 64 : index
    %169 = vector.load %arg10[%c0_70, %c64_71] : memref<8x128xf32, #tpu.memory_space<vmem>>, vector<1x64xf32>
    tpu.vector_store %arg10[%c0_70, %c64_71], %168 {strides = array<i32>} : memref<8x128xf32, #tpu.memory_space<vmem>>, vector<1x64xf32>,
    %c0_72 = arith.constant 0 : index
    %c0_73 = arith.constant 0 : index
    %170 = vector.load %arg10[%c0_72, %c0_73] : memref<8x128xf32, #tpu.memory_space<vmem>>, vector<8x128xf32>
    %171 = arith.truncf %170 : vector<8x128xf32> to vector<8x128xbf16>
    %c0_74 = arith.constant 0 : index
    %c0_75 = arith.constant 0 : index
    %172 = vector.load %arg6[%c0_74, %c0_75] : memref<128x128xbf16, #tpu.memory_space<vmem>>, vector<128x128xbf16>
    %cst_76 = arith.constant dense<0.000000e+00> : vector<8x128xf32>
    %173 = tpu.matmul %171, %172, %cst_76 {dimension_numbers = #tpu.dot_dimension_numbers<[1], [0], [0], [1], [0, 0, 1, 1], [], []>} : vector<8x128xbf16>, vector<128x128xbf16>, vector<8x128xf32> -> vector<8x128xf32>
    %c0_77 = arith.constant 0 : index
    %c0_78 = arith.constant 0 : index
    %174 = vector.load %arg7[%c0_77, %c0_78] : memref<1x128xf32, #tpu.memory_space<vmem>>, vector<1x128xf32>
    %175 = vector.broadcast %174 : vector<1x128xf32> to vector<8x128xf32>
    %176 = arith.addf %173, %175 : vector<8x128xf32>
    %c0_79 = arith.constant 0 : index
    %c0_80 = arith.constant 0 : index
    %177 = vector.load %arg8[%c0_79, %c0_80] : memref<8x128xf32, #tpu.memory_space<vmem>>, vector<8x128xf32>
    tpu.vector_store %arg8[%c0_79, %c0_80], %176 {strides = array<i32>} : memref<8x128xf32, #tpu.memory_space<vmem>>, vector<8x128xf32>,
    return
  }
}

</mosaic_0001>

<llo_original>
// kernel: bilstm_pallas.1
$region0: #{bilstm_pallas.1}
  #allocation0 [shape = 'u32[]', space=smem, size = 0x4, offset = 0x4, fixed_abs, tag = 'smem constant byte address 0x4 - core index']
  #allocation1 [shape = 'u32[144,128]{1,0:T(1,128)}', space=vmem, size = 0x12000, scoped, tag = 'internal scratch']
  #allocation2 [shape = 'f32[8,512]{1,0:T(8,128)}', space=vmem, size = 0x4000, scoped, tag = 'scratch operand']
  #allocation3 [shape = 'f32[8,128]{1,0:T(8,128)}', space=vmem, size = 0x1000, scoped, tag = 'scratch operand']
  %s0 = inlined_call_operand.vmem [shape: bf16[8,32], index: 0, kind: input, shape index: {}]
  %s1 = inlined_call_operand.hbm [shape: bf16[32,512], index: 1, kind: input, shape index: {}]
  %s2 = inlined_call_operand.hbm [shape: bf16[128,512], index: 2, kind: input, shape index: {}]
  %s3 = inlined_call_operand.vmem [shape: f32[1,512], index: 3, kind: input, shape index: {}]
  %s4 = inlined_call_operand.vmem [shape: f32[1,512], index: 4, kind: input, shape index: {}]
  %s5 = inlined_call_operand.vmem [shape: f32[1,512], index: 5, kind: input, shape index: {}]
  %s6 = inlined_call_operand.hbm [shape: bf16[128,128], index: 6, kind: input, shape index: {}]
  %s7 = inlined_call_operand.vmem [shape: f32[1,128], index: 7, kind: input, shape index: {}]
  %s8 = inlined_call_operand.hbm [shape: f32[8,128], index: 8, kind: output, shape index: {}]
  %s9 = sld [smem:[#allocation0]]
  $region54: #{bilstm_pallas.1} parent=0
    _
  %s11 = ssub.s32 1, %s9
  %s12 = scalar_select 0, %s11, %s9
  $region1: #{bilstm_pallas.1} parent=0
    #allocation4 [shape = 'u8[32768]{0}', space=vmem, size = 0x8000, scoped, tag = 'input window, operand 1, single buffered']
    #allocation5 [shape = 's32[1]{0}', space=sflag, size = 0x4, scoped, tag = 'scoped memory for bilstm_pallas.1']
    #allocation6 [shape = 's32[1]{0}', space=sflag, size = 0x4, scoped, tag = 'scoped memory for bilstm_pallas.1']
    #allocation7 [shape = 'u8[131072]{0}', space=vmem, size = 0x20000, scoped, tag = 'input window, operand 2, single buffered']
    #allocation8 [shape = 's32[1]{0}', space=sflag, size = 0x4, scoped, tag = 'scoped memory for bilstm_pallas.1']
    #allocation9 [shape = 'u8[32768]{0}', space=vmem, size = 0x8000, scoped, tag = 'input window, operand 6, single buffered']
    #allocation10 [shape = 'u8[4096]{0}', space=vmem, size = 0x1000, scoped, tag = 'output window, operand 0, single buffered']
    %13 = vsyncpa [#allocation5], 0
    %14 = vsyncpa [#allocation8], 0
    %15 = vsyncpa [#allocation6], 0
    // Predicated region
    $region2: #{bilstm_pallas.1} parent=1 // pred_check
      _
    $region3: #{bilstm_pallas.1} parent=1 // pred_check_branch
      %17 = sbr.rel (0) target = $region5
    $region4: #{bilstm_pallas.1} parent=1 // pred_region
      _
    $region5: #{bilstm_pallas.1} parent=1 // pred_fallthru
      _
    // Predicated region
    $region6: #{bilstm_pallas.1} parent=1 // pred_check
      _
    $region7: #{bilstm_pallas.1} parent=1 // pred_check_branch
      %19 = sbr.rel (0) target = $region9
    $region8: #{bilstm_pallas.1} parent=1 // pred_region
      %s21 = ssub.s32 1024, 1024
      %22 = vsyncadd [#allocation5], %s21
      %s23 = sshll.u32 [#allocation4], 4
      %s24 = int_to_ptr.vmem [resolvable:$true] %s23
      %29 = dma.hbm_to_vmem [thread:$0]  %s1, 1024, %s24, [#allocation5], 256, 256, 16
    $region9: #{bilstm_pallas.1} parent=1 // pred_fallthru
      _
    // Predicated region
    $region10: #{bilstm_pallas.1} parent=1 // pred_check
      _
    $region11: #{bilstm_pallas.1} parent=1 // pred_check_branch
      %31 = sbr.rel (0) target = $region13
    $region12: #{bilstm_pallas.1} parent=1 // pred_region
      %s33 = ssub.s32 4096, 4096
      %34 = vsyncadd [#allocation8], %s33
      %s35 = sshll.u32 [#allocation7], 4
      %s36 = int_to_ptr.vmem [resolvable:$true] %s35
      %41 = dma.hbm_to_vmem [thread:$0]  %s2, 4096, %s36, [#allocation8], 256, 256, 16
    $region13: #{bilstm_pallas.1} parent=1 // pred_fallthru
      _
    // Predicated region
    $region14: #{bilstm_pallas.1} parent=1 // pred_check
      _
    $region15: #{bilstm_pallas.1} parent=1 // pred_check_branch
      %43 = sbr.rel (0) target = $region17
    $region16: #{bilstm_pallas.1} parent=1 // pred_region
      _
    $region17: #{bilstm_pallas.1} parent=1 // pred_fallthru
      _
    // Predicated region
    $region18: #{bilstm_pallas.1} parent=1 // pred_check
      _
    $region19: #{bilstm_pallas.1} parent=1 // pred_check_branch
      %45 = sbr.rel (0) target = $region21
    $region20: #{bilstm_pallas.1} parent=1 // pred_region
      _
    $region21: #{bilstm_pallas.1} parent=1 // pred_fallthru
      _
    // Predicated region
    $region22: #{bilstm_pallas.1} parent=1 // pred_check
      _
    $region23: #{bilstm_pallas.1} parent=1 // pred_check_branch
      %47 = sbr.rel (0) target = $region25
    $region24: #{bilstm_pallas.1} parent=1 // pred_region
      _
    $region25: #{bilstm_pallas.1} parent=1 // pred_fallthru
      _
    // Predicated region
    $region26: #{bilstm_pallas.1} parent=1 // pred_check
      _
    $region27: #{bilstm_pallas.1} parent=1 // pred_check_branch
      %49 = sbr.rel (0) target = $region29
    $region28: #{bilstm_pallas.1} parent=1 // pred_region
      %s51 = ssub.s32 1024, 1024
      %52 = vsyncadd [#allocation8], %s51
      %s53 = sshll.u32 [#allocation9], 4
      %s54 = int_to_ptr.vmem [resolvable:$true] %s53
      %59 = dma.hbm_to_vmem [thread:$0]  %s6, 1024, %s54, [#allocation8], 64, 64, 4
    $region29: #{bilstm_pallas.1} parent=1 // pred_fallthru
      _
    // Predicated region
    $region30: #{bilstm_pallas.1} parent=1 // pred_check
      _
    $region31: #{bilstm_pallas.1} parent=1 // pred_check_branch
      %61 = sbr.rel (0) target = $region33
    $region32: #{bilstm_pallas.1} parent=1 // pred_region
      _
    $region33: #{bilstm_pallas.1} parent=1 // pred_fallthru
      _
    // Predicated region
    $region34: #{bilstm_pallas.1} parent=1 // pred_check
      _
    $region35: #{bilstm_pallas.1} parent=1 // pred_check_branch
      %63 = sbr.rel (0) target = $region37
    $region36: #{bilstm_pallas.1} parent=1 // pred_region
      %64 = dma.done [#allocation5], 1024
    $region37: #{bilstm_pallas.1} parent=1 // pred_fallthru
      _
    // Predicated region
    $region38: #{bilstm_pallas.1} parent=1 // pred_check
      _
    $region39: #{bilstm_pallas.1} parent=1 // pred_check_branch
      %66 = sbr.rel (0) target = $region41
    $region40: #{bilstm_pallas.1} parent=1 // pred_region
      %67 = dma.done [#allocation8], 4096
    $region41: #{bilstm_pallas.1} parent=1 // pred_fallthru
      _
    // Predicated region
    $region42: #{bilstm_pallas.1} parent=1 // pred_check
      _
    $region43: #{bilstm_pallas.1} parent=1 // pred_check_branch
      %69 = sbr.rel (0) target = $region45
    $region44: #{bilstm_pallas.1} parent=1 // pred_region
      %70 = dma.done [#allocation8], 1024
    $region45: #{bilstm_pallas.1} parent=1 // pred_fallthru
      _
    %v72 = vld [vmem:[%s0] sm:$0xf]
    %v73 = vld [vmem:[#allocation4] sm:$0xff]
    %v74 = vld [vmem:[#allocation4 + $0x8] sm:$0xff]
    %v75 = vld [vmem:[#allocation4 + $0x10] sm:$0xff]
    %v76 = vld [vmem:[#allocation4 + $0x18] sm:$0xff]
    %v77 = vld [vmem:[#allocation4 + $0x20] sm:$0xff]
    %v78 = vld [vmem:[#allocation4 + $0x28] sm:$0xff]
    %v79 = vld [vmem:[#allocation4 + $0x30] sm:$0xff]
    %v80 = vld [vmem:[#allocation4 + $0x38] sm:$0xff]
    %v81 = vld [vmem:[%s3] sm:$0xf]
    %v83 = vlaneseq
    %v84 = vshrl.u32 %v83, 7
    %v85 = vsub.s32 0, %v84
    %v86 = vrot.slane %v81, %v85
    %v87 = vlaneseq
    %v88 = vshrl.u32 %v87, 7
    %v89 = vsub.s32 1, %v88
    %v90 = vrot.slane %v81, %v89
    %v91 = vlaneseq
    %v92 = vshrl.u32 %v91, 7
    %v93 = vsub.s32 2, %v92
    %v94 = vrot.slane %v81, %v93
    %v95 = vlaneseq
    %v96 = vshrl.u32 %v95, 7
    %v97 = vsub.s32 3, %v96
    %v98 = vrot.slane %v81, %v97
    %v111 = vunpack.c.l.b16 %v73
    %v112 = vunpack.c.h.b16 %v73
    %v113 = vunpack.c.l.b16 %v74
    %v114 = vunpack.c.h.b16 %v74
    %v115 = vunpack.c.l.b16 %v75
    %v116 = vunpack.c.h.b16 %v75
    %v117 = vunpack.c.l.b16 %v76
    %v118 = vunpack.c.h.b16 %v76
    %v119 = vunpack.c.l.b16 %v77
    %v120 = vunpack.c.h.b16 %v77
    %v121 = vunpack.c.l.b16 %v78
    %v122 = vunpack.c.h.b16 %v78
    %v123 = vunpack.c.l.b16 %v79
    %v124 = vunpack.c.h.b16 %v79
    %v125 = vunpack.c.l.b16 %v80
    %v126 = vunpack.c.h.b16 %v80
    %v127 = vpack.c.b16 %v115, %v111
    %v128 = vpack.c.b16 %v116, %v112
    %v129 = vpack.c.b16 %v117, %v113
    %v130 = vpack.c.b16 %v118, %v114
    %v131 = vpack.c.b16 %v123, %v119
    %v132 = vpack.c.b16 %v124, %v120
    %v133 = vpack.c.b16 %v125, %v121
    %v134 = vpack.c.b16 %v126, %v122
    %vm143 = vcmask 261120
    %v145 = vsel %vm143, %v72, 0
    %147 = vmatprep.subr.bf16.mxu0 %v128
    %148 = vmatpush1.bf16.msra.mxu0 %v127
    %149 = vmatprep.subr.bf16.mxu0 %v132
    %150 = vmatpush1.bf16.msra.mxu0 %v131
    %151 = vmatprep.subr.bf16.mxu0 0
    %152 = vmatpush1.bf16.msra.mxu0 0
    %153 = vmatprep.subr.bf16.mxu0 0
    %154 = vmatpush1.bf16.msra.mxu0 0
    %155 = vmatprep.subr.bf16.mxu0 0
    %156 = vmatpush1.bf16.msra.mxu0 0
    %157 = vmatprep.subr.bf16.mxu0 0
    %158 = vmatpush1.bf16.msra.mxu0 0
    %159 = vmatprep.subr.bf16.mxu0 0
    %160 = vmatpush1.bf16.msra.mxu0 0
    %161 = vmatprep.subr.bf16.mxu0 0
    %162 = vmatpush1.bf16.msra.mxu0 0
    %163 = vmatprep.subr.bf16.mxu0 0
    %164 = vmatpush1.bf16.msra.mxu0 0
    %165 = vmatprep.subr.bf16.mxu0 0
    %166 = vmatpush1.bf16.msra.mxu0 0
    %167 = vmatprep.subr.bf16.mxu0 0
    %168 = vmatpush1.bf16.msra.mxu0 0
    %169 = vmatprep.subr.bf16.mxu0 0
    %170 = vmatpush1.bf16.msra.mxu0 0
    %171 = vmatprep.subr.bf16.mxu0 0
    %172 = vmatpush1.bf16.msra.mxu0 0
    %173 = vmatprep.subr.bf16.mxu0 0
    %174 = vmatpush1.bf16.msra.mxu0 0
    %175 = vmatprep.subr.bf16.mxu0 0
    %176 = vmatpush1.bf16.msra.mxu0 0
    %177 = vmatprep.subr.bf16.mxu0 0
    %178 = vmatpush1.bf16.msra.mxu0 0
    %179 = vmatprep.mubr.bf16.mxu0 0
    %180 = vmatmul.mubr.bf16.gmra.mrb[0].mxu0 %v145
    %v181 = vpop.f32.mrb[0].mxu0
    %v182 = vadd.f32 %v86, %v181
    %v183 = vpop.f32.mrb[0].mxu0
    %v184 = vadd.f32 %v90, %v183
    %v185 = vpop.f32.mrb[0].mxu0
    %v186 = vpop.f32.mrb[0].mxu0
    %187 = vdwg.mxu0
    %188 = vmatprep.subr.bf16.mxu0 %v130
    %189 = vmatpush1.bf16.msra.mxu0 %v129
    %190 = vmatprep.subr.bf16.mxu0 %v134
    %191 = vmatpush1.bf16.msra.mxu0 %v133
    %192 = vmatprep.subr.bf16.mxu0 0
    %193 = vmatpush1.bf16.msra.mxu0 0
    %194 = vmatprep.subr.bf16.mxu0 0
    %195 = vmatpush1.bf16.msra.mxu0 0
    %196 = vmatprep.subr.bf16.mxu0 0
    %197 = vmatpush1.bf16.msra.mxu0 0
    %198 = vmatprep.subr.bf16.mxu0 0
    %199 = vmatpush1.bf16.msra.mxu0 0
    %200 = vmatprep.subr.bf16.mxu0 0
    %201 = vmatpush1.bf16.msra.mxu0 0
    %202 = vmatprep.subr.bf16.mxu0 0
    %203 = vmatpush1.bf16.msra.mxu0 0
    %204 = vmatprep.subr.bf16.mxu0 0
    %205 = vmatpush1.bf16.msra.mxu0 0
    %206 = vmatprep.subr.bf16.mxu0 0
    %207 = vmatpush1.bf16.msra.mxu0 0
    %208 = vmatprep.subr.bf16.mxu0 0
    %209 = vmatpush1.bf16.msra.mxu0 0
    %210 = vmatprep.subr.bf16.mxu0 0
    %211 = vmatpush1.bf16.msra.mxu0 0
    %212 = vmatprep.subr.bf16.mxu0 0
    %213 = vmatpush1.bf16.msra.mxu0 0
    %214 = vmatprep.subr.bf16.mxu0 0
    %215 = vmatpush1.bf16.msra.mxu0 0
    %216 = vmatprep.subr.bf16.mxu0 0
    %217 = vmatpush1.bf16.msra.mxu0 0
    %218 = vmatprep.subr.bf16.mxu0 0
    %219 = vmatpush1.bf16.msra.mxu0 0
    %220 = vmatprep.mubr.bf16.mxu0 0
    %221 = vmatmul.mubr.bf16.gmra.mrb[0].mxu0 %v145
    %v222 = vpop.f32.mrb[0].mxu0
    %v223 = vadd.f32 %v94, %v222
    %v224 = vpop.f32.mrb[0].mxu0
    %v225 = vadd.f32 %v98, %v224
    %v226 = vpop.f32.mrb[0].mxu0
    %v227 = vpop.f32.mrb[0].mxu0
    %228 = vdwg.mxu0
    %229 = vst [vmem:[#allocation2] sm:$0xff] %v182
    %230 = vst [vmem:[#allocation2 + $0x8] sm:$0xff] %v184
    %231 = vst [vmem:[#allocation2 + $0x10] sm:$0xff] %v223
    %232 = vst [vmem:[#allocation2 + $0x18] sm:$0xff] %v225
    %v233 = vld [vmem:[%s4] sm:$0xf]
    %v234 = vld [vmem:[%s5] sm:$0xf]
    %v235 = vld [vmem:[#allocation2] ss:$8 sm:$0xf]
    %v236 = vtanh.pop %v235
    %v237 = vmul.f32 %v236, %v233
    %v238 = vadd.f32 %v237, %v234
    %v240 = vrot.slane %v238, 3
    %v242 = vmul.f32 %v238, %v240
    %v243 = vtanh.pop %v242
    %v244 = vrot.slane %v238, 2
    %v246 = vmul.f32 %v244, %v243
    %vm247 = vcmask 516096
    %248 = vst.msk [vmem:[#allocation3] sm:$0x1] %vm247, %v246
    %vm249 = vcmask 1040896
    %250 = vst.msk [vmem:[#allocation3 + $0x7] sm:$0x1] %vm249, %v246
    %s251 = scalar_lea.vmem [#allocation2], 1
    %v252 = vld [vmem:[%s251] ss:$8 sm:$0xf]
    %v253 = vpack.c.bf16 %v246, %v246
    %v254 = vld [vmem:[#allocation7] sm:$0xff]
    %v255 = vld [vmem:[#allocation7 + $0x8] sm:$0xff]
    %v256 = vld [vmem:[#allocation7 + $0x10] sm:$0xff]
    %v257 = vld [vmem:[#allocation7 + $0x18] sm:$0xff]
    %v258 = vld [vmem:[#allocation7 + $0x20] sm:$0xff]
    %v259 = vld [vmem:[#allocation7 + $0x28] sm:$0xff]
    %v260 = vld [vmem:[#allocation7 + $0x30] sm:$0xff]
    %v261 = vld [vmem:[#allocation7 + $0x38] sm:$0xff]
    %v262 = vld [vmem:[#allocation7 + $0x40] sm:$0xff]
    %v263 = vld [vmem:[#allocation7 + $0x48] sm:$0xff]
    %v264 = vld [vmem:[#allocation7 + $0x50] sm:$0xff]
    %v265 = vld [vmem:[#allocation7 + $0x58] sm:$0xff]
    %v266 = vld [vmem:[#allocation7 + $0x60] sm:$0xff]
    %v267 = vld [vmem:[#allocation7 + $0x68] sm:$0xff]
    %v268 = vld [vmem:[#allocation7 + $0x70] sm:$0xff]
    %v269 = vld [vmem:[#allocation7 + $0x78] sm:$0xff]
    %v270 = vld [vmem:[#allocation7 + $0x80] sm:$0xff]
    %v271 = vld [vmem:[#allocation7 + $0x88] sm:$0xff]
    %v272 = vld [vmem:[#allocation7 + $0x90] sm:$0xff]
    %v273 = vld [vmem:[#allocation7 + $0x98] sm:$0xff]
    %v274 = vld [vmem:[#allocation7 + $0xa0] sm:$0xff]
    %v275 = vld [vmem:[#allocation7 + $0xa8] sm:$0xff]
    %v276 = vld [vmem:[#allocation7 + $0xb0] sm:$0xff]
    %v277 = vld [vmem:[#allocation7 + $0xb8] sm:$0xff]
    %v278 = vld [vmem:[#allocation7 + $0xc0] sm:$0xff]
    %v279 = vld [vmem:[#allocation7 + $0xc8] sm:$0xff]
    %v280 = vld [vmem:[#allocation7 + $0xd0] sm:$0xff]
    %v281 = vld [vmem:[#allocation7 + $0xd8] sm:$0xff]
    %v282 = vld [vmem:[#allocation7 + $0xe0] sm:$0xff]
    %v283 = vld [vmem:[#allocation7 + $0xe8] sm:$0xff]
    %v284 = vld [vmem:[#allocation7 + $0xf0] sm:$0xff]
    %v285 = vld [vmem:[#allocation7 + $0xf8] sm:$0xff]
    %v318 = vunpack.c.l.b16 %v254
    %v319 = vunpack.c.h.b16 %v254
    %v320 = vunpack.c.l.b16 %v255
    %v321 = vunpack.c.h.b16 %v255
    %v322 = vunpack.c.l.b16 %v256
    %v323 = vunpack.c.h.b16 %v256
    %v324 = vunpack.c.l.b16 %v257
    %v325 = vunpack.c.h.b16 %v257
    %v326 = vunpack.c.l.b16 %v258
    %v327 = vunpack.c.h.b16 %v258
    %v328 = vunpack.c.l.b16 %v259
    %v329 = vunpack.c.h.b16 %v259
    %v330 = vunpack.c.l.b16 %v260
    %v331 = vunpack.c.h.b16 %v260
    %v332 = vunpack.c.l.b16 %v261
    %v333 = vunpack.c.h.b16 %v261
    %v334 = vunpack.c.l.b16 %v262
    %v335 = vunpack.c.h.b16 %v262
    %v336 = vunpack.c.l.b16 %v263
    %v337 = vunpack.c.h.b16 %v263
    %v338 = vunpack.c.l.b16 %v264
    %v339 = vunpack.c.h.b16 %v264
    %v340 = vunpack.c.l.b16 %v265
    %v341 = vunpack.c.h.b16 %v265
    %v342 = vunpack.c.l.b16 %v266
    %v343 = vunpack.c.h.b16 %v266
    %v344 = vunpack.c.l.b16 %v267
    %v345 = vunpack.c.h.b16 %v267
    %v346 = vunpack.c.l.b16 %v268
    %v347 = vunpack.c.h.b16 %v268
    %v348 = vunpack.c.l.b16 %v269
    %v349 = vunpack.c.h.b16 %v269
    %v350 = vunpack.c.l.b16 %v270
    %v351 = vunpack.c.h.b16 %v270
    %v352 = vunpack.c.l.b16 %v271
    %v353 = vunpack.c.h.b16 %v271
    %v354 = vunpack.c.l.b16 %v272
    %v355 = vunpack.c.h.b16 %v272
    %v356 = vunpack.c.l.b16 %v273
    %v357 = vunpack.c.h.b16 %v273
    %v358 = vunpack.c.l.b16 %v274
    %v359 = vunpack.c.h.b16 %v274
    %v360 = vunpack.c.l.b16 %v275
    %v361 = vunpack.c.h.b16 %v275
    %v362 = vunpack.c.l.b16 %v276
    %v363 = vunpack.c.h.b16 %v276
    %v364 = vunpack.c.l.b16 %v277
    %v365 = vunpack.c.h.b16 %v277
    %v366 = vunpack.c.l.b16 %v278
    %v367 = vunpack.c.h.b16 %v278
    %v368 = vunpack.c.l.b16 %v279
    %v369 = vunpack.c.h.b16 %v279
    %v370 = vunpack.c.l.b16 %v280
    %v371 = vunpack.c.h.b16 %v280
    %v372 = vunpack.c.l.b16 %v281
    %v373 = vunpack.c.h.b16 %v281
    %v374 = vunpack.c.l.b16 %v282
    %v375 = vunpack.c.h.b16 %v282
    %v376 = vunpack.c.l.b16 %v283
    %v377 = vunpack.c.h.b16 %v283
    %v378 = vunpack.c.l.b16 %v284
    %v379 = vunpack.c.h.b16 %v284
    %v380 = vunpack.c.l.b16 %v285
    %v381 = vunpack.c.h.b16 %v285
    %v382 = vpack.c.b16 %v322, %v318
    %v383 = vpack.c.b16 %v323, %v319
    %v384 = vpack.c.b16 %v324, %v320
    %v385 = vpack.c.b16 %v325, %v321
    %v386 = vpack.c.b16 %v330, %v326
    %v387 = vpack.c.b16 %v331, %v327
    %v388 = vpack.c.b16 %v332, %v328
    %v389 = vpack.c.b16 %v333, %v329
    %v390 = vpack.c.b16 %v338, %v334
    %v391 = vpack.c.b16 %v339, %v335
    %v392 = vpack.c.b16 %v340, %v336
    %v393 = vpack.c.b16 %v341, %v337
    %v394 = vpack.c.b16 %v346, %v342
    %v395 = vpack.c.b16 %v347, %v343
    %v396 = vpack.c.b16 %v348, %v344
    %v397 = vpack.c.b16 %v349, %v345
    %v398 = vpack.c.b16 %v354, %v350
    %v399 = vpack.c.b16 %v355, %v351
    %v400 = vpack.c.b16 %v356, %v352
    %v401 = vpack.c.b16 %v357, %v353
    %v402 = vpack.c.b16 %v362, %v358
    %v403 = vpack.c.b16 %v363, %v359
    %v404 = vpack.c.b16 %v364, %v360
    %v405 = vpack.c.b16 %v365, %v361
    %v406 = vpack.c.b16 %v370, %v366
    %v407 = vpack.c.b16 %v371, %v367
    %v408 = vpack.c.b16 %v372, %v368
    %v409 = vpack.c.b16 %v373, %v369
    %v410 = vpack.c.b16 %v378, %v374
    %v411 = vpack.c.b16 %v379, %v375
    %v412 = vpack.c.b16 %v380, %v376
    %v413 = vpack.c.b16 %v381, %v377
    %446 = vmatprep.subr.bf16.mxu0 %v383
    %447 = vmatpush1.bf16.msra.mxu0 %v382
    %448 = vmatprep.subr.bf16.mxu0 %v387
    %449 = vmatpush1.bf16.msra.mxu0 %v386
    %450 = vmatprep.subr.bf16.mxu0 %v391
    %451 = vmatpush1.bf16.msra.mxu0 %v390
    %452 = vmatprep.subr.bf16.mxu0 %v395
    %453 = vmatpush1.bf16.msra.mxu0 %v394
    %454 = vmatprep.subr.bf16.mxu0 %v399
    %455 = vmatpush1.bf16.msra.mxu0 %v398
    %456 = vmatprep.subr.bf16.mxu0 %v403
    %457 = vmatpush1.bf16.msra.mxu0 %v402
    %458 = vmatprep.subr.bf16.mxu0 %v407
    %459 = vmatpush1.bf16.msra.mxu0 %v406
    %460 = vmatprep.subr.bf16.mxu0 %v411
    %461 = vmatpush1.bf16.msra.mxu0 %v410
    %462 = vmatprep.subr.bf16.mxu0 0
    %463 = vmatpush1.bf16.msra.mxu0 0
    %464 = vmatprep.subr.bf16.mxu0 0
    %465 = vmatpush1.bf16.msra.mxu0 0
    %466 = vmatprep.subr.bf16.mxu0 0
    %467 = vmatpush1.bf16.msra.mxu0 0
    %468 = vmatprep.subr.bf16.mxu0 0
    %469 = vmatpush1.bf16.msra.mxu0 0
    %470 = vmatprep.subr.bf16.mxu0 0
    %471 = vmatpush1.bf16.msra.mxu0 0
    %472 = vmatprep.subr.bf16.mxu0 0
    %473 = vmatpush1.bf16.msra.mxu0 0
    %474 = vmatprep.subr.bf16.mxu0 0
    %475 = vmatpush1.bf16.msra.mxu0 0
    %476 = vmatprep.subr.bf16.mxu0 0
    %477 = vmatpush1.bf16.msra.mxu0 0
    %478 = vmatprep.mubr.bf16.mxu0 0
    %479 = vmatmul.mubr.bf16.gmra.mrb[0].mxu0 %v253
    %v480 = vpop.f32.mrb[0].mxu0
    %v481 = vadd.f32 0.0, %v480
    %v482 = vpop.f32.mrb[0].mxu0
    %v483 = vadd.f32 0.0, %v482
    %v484 = vpop.f32.mrb[0].mxu0
    %v485 = vpop.f32.mrb[0].mxu0
    %486 = vdwg.mxu0
    %487 = vmatprep.subr.bf16.mxu0 %v385
    %488 = vmatpush1.bf16.msra.mxu0 %v384
    %489 = vmatprep.subr.bf16.mxu0 %v389
    %490 = vmatpush1.bf16.msra.mxu0 %v388
    %491 = vmatprep.subr.bf16.mxu0 %v393
    %492 = vmatpush1.bf16.msra.mxu0 %v392
    %493 = vmatprep.subr.bf16.mxu0 %v397
    %494 = vmatpush1.bf16.msra.mxu0 %v396
    %495 = vmatprep.subr.bf16.mxu0 %v401
    %496 = vmatpush1.bf16.msra.mxu0 %v400
    %497 = vmatprep.subr.bf16.mxu0 %v405
    %498 = vmatpush1.bf16.msra.mxu0 %v404
    %499 = vmatprep.subr.bf16.mxu0 %v409
    %500 = vmatpush1.bf16.msra.mxu0 %v408
    %501 = vmatprep.subr.bf16.mxu0 %v413
    %502 = vmatpush1.bf16.msra.mxu0 %v412
    %503 = vmatprep.subr.bf16.mxu0 0
    %504 = vmatpush1.bf16.msra.mxu0 0
    %505 = vmatprep.subr.bf16.mxu0 0
    %506 = vmatpush1.bf16.msra.mxu0 0
    %507 = vmatprep.subr.bf16.mxu0 0
    %508 = vmatpush1.bf16.msra.mxu0 0
    %509 = vmatprep.subr.bf16.mxu0 0
    %510 = vmatpush1.bf16.msra.mxu0 0
    %511 = vmatprep.subr.bf16.mxu0 0
    %512 = vmatpush1.bf16.msra.mxu0 0
    %513 = vmatprep.subr.bf16.mxu0 0
    %514 = vmatpush1.bf16.msra.mxu0 0
    %515 = vmatprep.subr.bf16.mxu0 0
    %516 = vmatpush1.bf16.msra.mxu0 0
    %517 = vmatprep.subr.bf16.mxu0 0
    %518 = vmatpush1.bf16.msra.mxu0 0
    %519 = vmatprep.mubr.bf16.mxu0 0
    %520 = vmatmul.mubr.bf16.gmra.mrb[0].mxu0 %v253
    %v521 = vpop.f32.mrb[0].mxu0
    %v522 = vadd.f32 0.0, %v521
    %v523 = vpop.f32.mrb[0].mxu0
    %v524 = vadd.f32 0.0, %v523
    %v525 = vpop.f32.mrb[0].mxu0
    %v526 = vpop.f32.mrb[0].mxu0
    %527 = vdwg.mxu0
    %v532 = vcombine.low %v481, %v483
    %v533 = vcombine.low %v522, %v524
    %v535 = vunpack.c.l.s4 1966171168
    %v536 = vunpack.c.0.s8 %v535
    %v537 = vlaneseq
    %v538 = vshrl.u32 %v537, 7
    %v539 = vsub.s32 %v536, %v538
    %v540 = vrot.slane %v532, %v539
    %v542 = vunpack.c.l.s4 1966171168
    %v543 = vunpack.c.0.s8 %v542
    %v544 = vlaneseq
    %v545 = vshrl.u32 %v544, 7
    %v546 = vsub.s32 %v543, %v545
    %v547 = vrot.slane %v533, %v546
    %v548 = vcombine.low %v540, %v547
    %v550 = vunpack.c.l.s4 1966171168
    %v551 = vunpack.c.0.s8 %v550
    %v552 = vlaneseq
    %v553 = vshrl.u32 %v552, 7
    %v554 = vsub.s32 %v551, %v553
    %v555 = vrot.slane %v548, %v554
    %v557 = vadd.f32 %v252, %v555
    %v558 = vtanh.pop %v557
    %v559 = vmul.f32 %v558, %v233
    %v560 = vadd.f32 %v559, %v234
    %v562 = vrot.slane %v560, 1
    %v564 = vmul.f32 %v562, %v242
    %v565 = vrot.slane %v560, 3
    %v567 = vmul.f32 %v560, %v565
    %v568 = vadd.f32 %v564, %v567
    %v569 = vtanh.pop %v568
    %v570 = vrot.slane %v560, 2
    %v572 = vmul.f32 %v570, %v569
    %573 = vst.msk [vmem:[#allocation3 + $0x1] sm:$0x1] %vm247, %v572
    %574 = vst.msk [vmem:[#allocation3 + $0x6] sm:$0x1] %vm249, %v572
    %s575 = scalar_lea.vmem [#allocation2], 2
    %v576 = vld [vmem:[%s575] ss:$8 sm:$0xf]
    %v577 = vpack.c.bf16 %v572, %v572
    %v578 = vld [vmem:[#allocation7] sm:$0xff]
    %v579 = vld [vmem:[#allocation7 + $0x8] sm:$0xff]
    %v580 = vld [vmem:[#allocation7 + $0x10] sm:$0xff]
    %v581 = vld [vmem:[#allocation7 + $0x18] sm:$0xff]
    %v582 = vld [vmem:[#allocation7 + $0x20] sm:$0xff]
    %v583 = vld [vmem:[#allocation7 + $0x28] sm:$0xff]
    %v584 = vld [vmem:[#allocation7 + $0x30] sm:$0xff]
    %v585 = vld [vmem:[#allocation7 + $0x38] sm:$0xff]
    %v586 = vld [vmem:[#allocation7 + $0x40] sm:$0xff]
    %v587 = vld [vmem:[#allocation7 + $0x48] sm:$0xff]
    %v588 = vld [vmem:[#allocation7 + $0x50] sm:$0xff]
    %v589 = vld [vmem:[#allocation7 + $0x58] sm:$0xff]
    %v590 = vld [vmem:[#allocation7 + $0x60] sm:$0xff]
    %v591 = vld [vmem:[#allocation7 + $0x68] sm:$0xff]
    %v592 = vld [vmem:[#allocation7 + $0x70] sm:$0xff]
    %v593 = vld [vmem:[#allocation7 + $0x78] sm:$0xff]
    %v594 = vld [vmem:[#allocation7 + $0x80] sm:$0xff]
    %v595 = vld [vmem:[#allocation7 + $0x88] sm:$0xff]
    %v596 = vld [vmem:[#allocation7 + $0x90] sm:$0xff]
    %v597 = vld [vmem:[#allocation7 + $0x98] sm:$0xff]
    %v598 = vld [vmem:[#allocation7 + $0xa0] sm:$0xff]
    %v599 = vld [vmem:[#allocation7 + $0xa8] sm:$0xff]
    %v600 = vld [vmem:[#allocation7 + $0xb0] sm:$0xff]
    %v601 = vld [vmem:[#allocation7 + $0xb8] sm:$0xff]
    %v602 = vld [vmem:[#allocation7 + $0xc0] sm:$0xff]
    %v603 = vld [vmem:[#allocation7 + $0xc8] sm:$0xff]
    %v604 = vld [vmem:[#allocation7 + $0xd0] sm:$0xff]
    %v605 = vld [vmem:[#allocation7 + $0xd8] sm:$0xff]
    %v606 = vld [vmem:[#allocation7 + $0xe0] sm:$0xff]
    %v607 = vld [vmem:[#allocation7 + $0xe8] sm:$0xff]
    %v608 = vld [vmem:[#allocation7 + $0xf0] sm:$0xff]
    %v609 = vld [vmem:[#allocation7 + $0xf8] sm:$0xff]
    %v642 = vunpack.c.l.b16 %v578
    %v643 = vunpack.c.h.b16 %v578
    %v644 = vunpack.c.l.b16 %v579
    %v645 = vunpack.c.h.b16 %v579
    %v646 = vunpack.c.l.b16 %v580
    %v647 = vunpack.c.h.b16 %v580
    %v648 = vunpack.c.l.b16 %v581
    %v649 = vunpack.c.h.b16 %v581
    %v650 = vunpack.c.l.b16 %v582
    %v651 = vunpack.c.h.b16 %v582
    %v652 = vunpack.c.l.b16 %v583
    %v653 = vunpack.c.h.b16 %v583
    %v654 = vunpack.c.l.b16 %v584
    %v655 = vunpack.c.h.b16 %v584
    %v656 = vunpack.c.l.b16 %v585
    %v657 = vunpack.c.h.b16 %v585
    %v658 = vunpack.c.l.b16 %v586
    %v659 = vunpack.c.h.b16 %v586
    %v660 = vunpack.c.l.b16 %v587
    %v661 = vunpack.c.h.b16 %v587
    %v662 = vunpack.c.l.b16 %v588
    %v663 = vunpack.c.h.b16 %v588
    %v664 = vunpack.c.l.b16 %v589
    %v665 = vunpack.c.h.b16 %v589
    %v666 = vunpack.c.l.b16 %v590
    %v667 = vunpack.c.h.b16 %v590
    %v668 = vunpack.c.l.b16 %v591
    %v669 = vunpack.c.h.b16 %v591
    %v670 = vunpack.c.l.b16 %v592
    %v671 = vunpack.c.h.b16 %v592
    %v672 = vunpack.c.l.b16 %v593
    %v673 = vunpack.c.h.b16 %v593
    %v674 = vunpack.c.l.b16 %v594
    %v675 = vunpack.c.h.b16 %v594
    %v676 = vunpack.c.l.b16 %v595
    %v677 = vunpack.c.h.b16 %v595
    %v678 = vunpack.c.l.b16 %v596
    %v679 = vunpack.c.h.b16 %v596
    %v680 = vunpack.c.l.b16 %v597
    %v681 = vunpack.c.h.b16 %v597
    %v682 = vunpack.c.l.b16 %v598
    %v683 = vunpack.c.h.b16 %v598
    %v684 = vunpack.c.l.b16 %v599
    %v685 = vunpack.c.h.b16 %v599
    %v686 = vunpack.c.l.b16 %v600
    %v687 = vunpack.c.h.b16 %v600
    %v688 = vunpack.c.l.b16 %v601
    %v689 = vunpack.c.h.b16 %v601
    %v690 = vunpack.c.l.b16 %v602
    %v691 = vunpack.c.h.b16 %v602
    %v692 = vunpack.c.l.b16 %v603
    %v693 = vunpack.c.h.b16 %v603
    %v694 = vunpack.c.l.b16 %v604
    %v695 = vunpack.c.h.b16 %v604
    %v696 = vunpack.c.l.b16 %v605
    %v697 = vunpack.c.h.b16 %v605
    %v698 = vunpack.c.l.b16 %v606
    %v699 = vunpack.c.h.b16 %v606
    %v700 = vunpack.c.l.b16 %v607
    %v701 = vunpack.c.h.b16 %v607
    %v702 = vunpack.c.l.b16 %v608
    %v703 = vunpack.c.h.b16 %v608
    %v704 = vunpack.c.l.b16 %v609
    %v705 = vunpack.c.h.b16 %v609
    %v706 = vpack.c.b16 %v646, %v642
    %v707 = vpack.c.b16 %v647, %v643
    %v708 = vpack.c.b16 %v648, %v644
    %v709 = vpack.c.b16 %v649, %v645
    %v710 = vpack.c.b16 %v654, %v650
    %v711 = vpack.c.b16 %v655, %v651
    %v712 = vpack.c.b16 %v656, %v652
    %v713 = vpack.c.b16 %v657, %v653
    %v714 = vpack.c.b16 %v662, %v658
    %v715 = vpack.c.b16 %v663, %v659
    %v716 = vpack.c.b16 %v664, %v660
    %v717 = vpack.c.b16 %v665, %v661
    %v718 = vpack.c.b16 %v670, %v666
    %v719 = vpack.c.b16 %v671, %v667
    %v720 = vpack.c.b16 %v672, %v668
    %v721 = vpack.c.b16 %v673, %v669
    %v722 = vpack.c.b16 %v678, %v674
    %v723 = vpack.c.b16 %v679, %v675
    %v724 = vpack.c.b16 %v680, %v676
    %v725 = vpack.c.b16 %v681, %v677
    %v726 = vpack.c.b16 %v686, %v682
    %v727 = vpack.c.b16 %v687, %v683
    %v728 = vpack.c.b16 %v688, %v684
    %v729 = vpack.c.b16 %v689, %v685
    %v730 = vpack.c.b16 %v694, %v690
    %v731 = vpack.c.b16 %v695, %v691
    %v732 = vpack.c.b16 %v696, %v692
    %v733 = vpack.c.b16 %v697, %v693
    %v734 = vpack.c.b16 %v702, %v698
    %v735 = vpack.c.b16 %v703, %v699
    %v736 = vpack.c.b16 %v704, %v700
    %v737 = vpack.c.b16 %v705, %v701
    %770 = vmatprep.subr.bf16.mxu0 %v707
    %771 = vmatpush1.bf16.msra.mxu0 %v706
    %772 = vmatprep.subr.bf16.mxu0 %v711
    %773 = vmatpush1.bf16.msra.mxu0 %v710
    %774 = vmatprep.subr.bf16.mxu0 %v715
    %775 = vmatpush1.bf16.msra.mxu0 %v714
    %776 = vmatprep.subr.bf16.mxu0 %v719
    %777 = vmatpush1.bf16.msra.mxu0 %v718
    %778 = vmatprep.subr.bf16.mxu0 %v723
    %779 = vmatpush1.bf16.msra.mxu0 %v722
    %780 = vmatprep.subr.bf16.mxu0 %v727
    %781 = vmatpush1.bf16.msra.mxu0 %v726
    %782 = vmatprep.subr.bf16.mxu0 %v731
    %783 = vmatpush1.bf16.msra.mxu0 %v730
    %784 = vmatprep.subr.bf16.mxu0 %v735
    %785 = vmatpush1.bf16.msra.mxu0 %v734
    %786 = vmatprep.subr.bf16.mxu0 0
    %787 = vmatpush1.bf16.msra.mxu0 0
    %788 = vmatprep.subr.bf16.mxu0 0
    %789 = vmatpush1.bf16.msra.mxu0 0
    %790 = vmatprep.subr.bf16.mxu0 0
    %791 = vmatpush1.bf16.msra.mxu0 0
    %792 = vmatprep.subr.bf16.mxu0 0
    %793 = vmatpush1.bf16.msra.mxu0 0
    %794 = vmatprep.subr.bf16.mxu0 0
    %795 = vmatpush1.bf16.msra.mxu0 0
    %796 = vmatprep.subr.bf16.mxu0 0
    %797 = vmatpush1.bf16.msra.mxu0 0
    %798 = vmatprep.subr.bf16.mxu0 0
    %799 = vmatpush1.bf16.msra.mxu0 0
    %800 = vmatprep.subr.bf16.mxu0 0
    %801 = vmatpush1.bf16.msra.mxu0 0
    %802 = vmatprep.mubr.bf16.mxu0 0
    %803 = vmatmul.mubr.bf16.gmra.mrb[0].mxu0 %v577
    %v804 = vpop.f32.mrb[0].mxu0
    %v805 = vadd.f32 0.0, %v804
    %v806 = vpop.f32.mrb[0].mxu0
    %v807 = vadd.f32 0.0, %v806
    %v808 = vpop.f32.mrb[0].mxu0
    %v809 = vpop.f32.mrb[0].mxu0
    %810 = vdwg.mxu0
    %811 = vmatprep.subr.bf16.mxu0 %v709
    %812 = vmatpush1.bf16.msra.mxu0 %v708
    %813 = vmatprep.subr.bf16.mxu0 %v713
    %814 = vmatpush1.bf16.msra.mxu0 %v712
    %815 = vmatprep.subr.bf16.mxu0 %v717
    %816 = vmatpush1.bf16.msra.mxu0 %v716
    %817 = vmatprep.subr.bf16.mxu0 %v721
    %818 = vmatpush1.bf16.msra.mxu0 %v720
    %819 = vmatprep.subr.bf16.mxu0 %v725
    %820 = vmatpush1.bf16.msra.mxu0 %v724
    %821 = vmatprep.subr.bf16.mxu0 %v729
    %822 = vmatpush1.bf16.msra.mxu0 %v728
    %823 = vmatprep.subr.bf16.mxu0 %v733
    %824 = vmatpush1.bf16.msra.mxu0 %v732
    %825 = vmatprep.subr.bf16.mxu0 %v737
    %826 = vmatpush1.bf16.msra.mxu0 %v736
    %827 = vmatprep.subr.bf16.mxu0 0
    %828 = vmatpush1.bf16.msra.mxu0 0
    %829 = vmatprep.subr.bf16.mxu0 0
    %830 = vmatpush1.bf16.msra.mxu0 0
    %831 = vmatprep.subr.bf16.mxu0 0
    %832 = vmatpush1.bf16.msra.mxu0 0
    %833 = vmatprep.subr.bf16.mxu0 0
    %834 = vmatpush1.bf16.msra.mxu0 0
    %835 = vmatprep.subr.bf16.mxu0 0
    %836 = vmatpush1.bf16.msra.mxu0 0
    %837 = vmatprep.subr.bf16.mxu0 0
    %838 = vmatpush1.bf16.msra.mxu0 0
    %839 = vmatprep.subr.bf16.mxu0 0
    %840 = vmatpush1.bf16.msra.mxu0 0
    %841 = vmatprep.subr.bf16.mxu0 0
    %842 = vmatpush1.bf16.msra.mxu0 0
    %843 = vmatprep.mubr.bf16.mxu0 0
    %844 = vmatmul.mubr.bf16.gmra.mrb[0].mxu0 %v577
    %v845 = vpop.f32.mrb[0].mxu0
    %v846 = vadd.f32 0.0, %v845
    %v847 = vpop.f32.mrb[0].mxu0
    %v848 = vadd.f32 0.0, %v847
    %v849 = vpop.f32.mrb[0].mxu0
    %v850 = vpop.f32.mrb[0].mxu0
    %851 = vdwg.mxu0
    %v856 = vcombine.low %v805, %v807
    %v857 = vcombine.low %v846, %v848
    %v859 = vunpack.c.l.s4 1966171168
    %v860 = vunpack.c.0.s8 %v859
    %v861 = vlaneseq
    %v862 = vshrl.u32 %v861, 7
    %v863 = vsub.s32 %v860, %v862
    %v864 = vrot.slane %v856, %v863
    %v866 = vunpack.c.l.s4 1966171168
    %v867 = vunpack.c.0.s8 %v866
    %v868 = vlaneseq
    %v869 = vshrl.u32 %v868, 7
    %v870 = vsub.s32 %v867, %v869
    %v871 = vrot.slane %v857, %v870
    %v872 = vcombine.low %v864, %v871
    %v874 = vunpack.c.l.s4 1966171168
    %v875 = vunpack.c.0.s8 %v874
    %v876 = vlaneseq
    %v877 = vshrl.u32 %v876, 7
    %v878 = vsub.s32 %v875, %v877
    %v879 = vrot.slane %v872, %v878
    %v881 = vadd.f32 %v576, %v879
    %v882 = vtanh.pop %v881
    %v883 = vmul.f32 %v882, %v233
    %v884 = vadd.f32 %v883, %v234
    %v886 = vrot.slane %v884, 1
    %v888 = vmul.f32 %v886, %v568
    %v889 = vrot.slane %v884, 3
    %v891 = vmul.f32 %v884, %v889
    %v892 = vadd.f32 %v888, %v891
    %v893 = vtanh.pop %v892
    %v894 = vrot.slane %v884, 2
    %v896 = vmul.f32 %v894, %v893
    %897 = vst.msk [vmem:[#allocation3 + $0x2] sm:$0x1] %vm247, %v896
    %898 = vst.msk [vmem:[#allocation3 + $0x5] sm:$0x1] %vm249, %v896
    %s899 = scalar_lea.vmem [#allocation2], 3
    %v900 = vld [vmem:[%s899] ss:$8 sm:$0xf]
    %v901 = vpack.c.bf16 %v896, %v896
    %v902 = vld [vmem:[#allocation7] sm:$0xff]
    %v903 = vld [vmem:[#allocation7 + $0x8] sm:$0xff]
    %v904 = vld [vmem:[#allocation7 + $0x10] sm:$0xff]
    %v905 = vld [vmem:[#allocation7 + $0x18] sm:$0xff]
    %v906 = vld [vmem:[#allocation7 + $0x20] sm:$0xff]
    %v907 = vld [vmem:[#allocation7 + $0x28] sm:$0xff]
    %v908 = vld [vmem:[#allocation7 + $0x30] sm:$0xff]
    %v909 = vld [vmem:[#allocation7 + $0x38] sm:$0xff]
    %v910 = vld [vmem:[#allocation7 + $0x40] sm:$0xff]
    %v911 = vld [vmem:[#allocation7 + $0x48] sm:$0xff]
    %v912 = vld [vmem:[#allocation7 + $0x50] sm:$0xff]
    %v913 = vld [vmem:[#allocation7 + $0x58] sm:$0xff]
    %v914 = vld [vmem:[#allocation7 + $0x60] sm:$0xff]
    %v915 = vld [vmem:[#allocation7 + $0x68] sm:$0xff]
    %v916 = vld [vmem:[#allocation7 + $0x70] sm:$0xff]
    %v917 = vld [vmem:[#allocation7 + $0x78] sm:$0xff]
    %v918 = vld [vmem:[#allocation7 + $0x80] sm:$0xff]
    %v919 = vld [vmem:[#allocation7 + $0x88] sm:$0xff]
    %v920 = vld [vmem:[#allocation7 + $0x90] sm:$0xff]
    %v921 = vld [vmem:[#allocation7 + $0x98] sm:$0xff]
    %v922 = vld [vmem:[#allocation7 + $0xa0] sm:$0xff]
    %v923 = vld [vmem:[#allocation7 + $0xa8] sm:$0xff]
    %v924 = vld [vmem:[#allocation7 + $0xb0] sm:$0xff]
    %v925 = vld [vmem:[#allocation7 + $0xb8] sm:$0xff]
    %v926 = vld [vmem:[#allocation7 + $0xc0] sm:$0xff]
    %v927 = vld [vmem:[#allocation7 + $0xc8] sm:$0xff]
    %v928 = vld [vmem:[#allocation7 + $0xd0] sm:$0xff]
    %v929 = vld [vmem:[#allocation7 + $0xd8] sm:$0xff]
    %v930 = vld [vmem:[#allocation7 + $0xe0] sm:$0xff]
    %v931 = vld [vmem:[#allocation7 + $0xe8] sm:$0xff]
    %v932 = vld [vmem:[#allocation7 + $0xf0] sm:$0xff]
    %v933 = vld [vmem:[#allocation7 + $0xf8] sm:$0xff]
    %v966 = vunpack.c.l.b16 %v902
    %v967 = vunpack.c.h.b16 %v902
    %v968 = vunpack.c.l.b16 %v903
    %v969 = vunpack.c.h.b16 %v903
    %v970 = vunpack.c.l.b16 %v904
    %v971 = vunpack.c.h.b16 %v904
    %v972 = vunpack.c.l.b16 %v905
    %v973 = vunpack.c.h.b16 %v905
    %v974 = vunpack.c.l.b16 %v906
    %v975 = vunpack.c.h.b16 %v906
    %v976 = vunpack.c.l.b16 %v907
    %v977 = vunpack.c.h.b16 %v907
    %v978 = vunpack.c.l.b16 %v908
    %v979 = vunpack.c.h.b16 %v908
    %v980 = vunpack.c.l.b16 %v909
    %v981 = vunpack.c.h.b16 %v909
    %v982 = vunpack.c.l.b16 %v910
    %v983 = vunpack.c.h.b16 %v910
    %v984 = vunpack.c.l.b16 %v911
    %v985 = vunpack.c.h.b16 %v911
    %v986 = vunpack.c.l.b16 %v912
    %v987 = vunpack.c.h.b16 %v912
    %v988 = vunpack.c.l.b16 %v913
    %v989 = vunpack.c.h.b16 %v913
    %v990 = vunpack.c.l.b16 %v914
    %v991 = vunpack.c.h.b16 %v914
    %v992 = vunpack.c.l.b16 %v915
    %v993 = vunpack.c.h.b16 %v915
    %v994 = vunpack.c.l.b16 %v916
    %v995 = vunpack.c.h.b16 %v916
    %v996 = vunpack.c.l.b16 %v917
    %v997 = vunpack.c.h.b16 %v917
    %v998 = vunpack.c.l.b16 %v918
    %v999 = vunpack.c.h.b16 %v918
    %v1000 = vunpack.c.l.b16 %v919
    %v1001 = vunpack.c.h.b16 %v919
    %v1002 = vunpack.c.l.b16 %v920
    %v1003 = vunpack.c.h.b16 %v920
    %v1004 = vunpack.c.l.b16 %v921
    %v1005 = vunpack.c.h.b16 %v921
    %v1006 = vunpack.c.l.b16 %v922
    %v1007 = vunpack.c.h.b16 %v922
    %v1008 = vunpack.c.l.b16 %v923
    %v1009 = vunpack.c.h.b16 %v923
    %v1010 = vunpack.c.l.b16 %v924
    %v1011 = vunpack.c.h.b16 %v924
    %v1012 = vunpack.c.l.b16 %v925
    %v1013 = vunpack.c.h.b16 %v925
    %v1014 = vunpack.c.l.b16 %v926
    %v1015 = vunpack.c.h.b16 %v926
    %v1016 = vunpack.c.l.b16 %v927
    %v1017 = vunpack.c.h.b16 %v927
    %v1018 = vunpack.c.l.b16 %v928
    %v1019 = vunpack.c.h.b16 %v928
    %v1020 = vunpack.c.l.b16 %v929
    %v1021 = vunpack.c.h.b16 %v929
    %v1022 = vunpack.c.l.b16 %v930
    %v1023 = vunpack.c.h.b16 %v930
    %v1024 = vunpack.c.l.b16 %v931
    %v1025 = vunpack.c.h.b16 %v931
    %v1026 = vunpack.c.l.b16 %v932
    %v1027 = vunpack.c.h.b16 %v932
    %v1028 = vunpack.c.l.b16 %v933
    %v1029 = vunpack.c.h.b16 %v933
    %v1030 = vpack.c.b16 %v970, %v966
    %v1031 = vpack.c.b16 %v971, %v967
    %v1032 = vpack.c.b16 %v972, %v968
    %v1033 = vpack.c.b16 %v973, %v969
    %v1034 = vpack.c.b16 %v978, %v974
    %v1035 = vpack.c.b16 %v979, %v975
    %v1036 = vpack.c.b16 %v980, %v976
    %v1037 = vpack.c.b16 %v981, %v977
    %v1038 = vpack.c.b16 %v986, %v982
    %v1039 = vpack.c.b16 %v987, %v983
    %v1040 = vpack.c.b16 %v988, %v984
    %v1041 = vpack.c.b16 %v989, %v985
    %v1042 = vpack.c.b16 %v994, %v990
    %v1043 = vpack.c.b16 %v995, %v991
    %v1044 = vpack.c.b16 %v996, %v992
    %v1045 = vpack.c.b16 %v997, %v993
    %v1046 = vpack.c.b16 %v1002, %v998
    %v1047 = vpack.c.b16 %v1003, %v999
    %v1048 = vpack.c.b16 %v1004, %v1000
    %v1049 = vpack.c.b16 %v1005, %v1001
    %v1050 = vpack.c.b16 %v1010, %v1006
    %v1051 = vpack.c.b16 %v1011, %v1007
    %v1052 = vpack.c.b16 %v1012, %v1008
    %v1053 = vpack.c.b16 %v1013, %v1009
    %v1054 = vpack.c.b16 %v1018, %v1014
    %v1055 = vpack.c.b16 %v1019, %v1015
    %v1056 = vpack.c.b16 %v1020, %v1016
    %v1057 = vpack.c.b16 %v1021, %v1017
    %v1058 = vpack.c.b16 %v1026, %v1022
    %v1059 = vpack.c.b16 %v1027, %v1023
    %v1060 = vpack.c.b16 %v1028, %v1024
    %v1061 = vpack.c.b16 %v1029, %v1025
    %1094 = vmatprep.subr.bf16.mxu0 %v1031
    %1095 = vmatpush1.bf16.msra.mxu0 %v1030
    %1096 = vmatprep.subr.bf16.mxu0 %v1035
    %1097 = vmatpush1.bf16.msra.mxu0 %v1034
    %1098 = vmatprep.subr.bf16.mxu0 %v1039
    %1099 = vmatpush1.bf16.msra.mxu0 %v1038
    %1100 = vmatprep.subr.bf16.mxu0 %v1043
    %1101 = vmatpush1.bf16.msra.mxu0 %v1042
    %1102 = vmatprep.subr.bf16.mxu0 %v1047
    %1103 = vmatpush1.bf16.msra.mxu0 %v1046
    %1104 = vmatprep.subr.bf16.mxu0 %v1051
    %1105 = vmatpush1.bf16.msra.mxu0 %v1050
    %1106 = vmatprep.subr.bf16.mxu0 %v1055
    %1107 = vmatpush1.bf16.msra.mxu0 %v1054
    %1108 = vmatprep.subr.bf16.mxu0 %v1059
    %1109 = vmatpush1.bf16.msra.mxu0 %v1058
    %1110 = vmatprep.subr.bf16.mxu0 0
    %1111 = vmatpush1.bf16.msra.mxu0 0
    %1112 = vmatprep.subr.bf16.mxu0 0
    %1113 = vmatpush1.bf16.msra.mxu0 0
    %1114 = vmatprep.subr.bf16.mxu0 0
    %1115 = vmatpush1.bf16.msra.mxu0 0
    %1116 = vmatprep.subr.bf16.mxu0 0
    %1117 = vmatpush1.bf16.msra.mxu0 0
    %1118 = vmatprep.subr.bf16.mxu0 0
    %1119 = vmatpush1.bf16.msra.mxu0 0
    %1120 = vmatprep.subr.bf16.mxu0 0
    %1121 = vmatpush1.bf16.msra.mxu0 0
    %1122 = vmatprep.subr.bf16.mxu0 0
    %1123 = vmatpush1.bf16.msra.mxu0 0
    %1124 = vmatprep.subr.bf16.mxu0 0
    %1125 = vmatpush1.bf16.msra.mxu0 0
    %1126 = vmatprep.mubr.bf16.mxu0 0
    %1127 = vmatmul.mubr.bf16.gmra.mrb[0].mxu0 %v901
    %v1128 = vpop.f32.mrb[0].mxu0
    %v1129 = vadd.f32 0.0, %v1128
    %v1130 = vpop.f32.mrb[0].mxu0
    %v1131 = vadd.f32 0.0, %v1130
    %v1132 = vpop.f32.mrb[0].mxu0
    %v1133 = vpop.f32.mrb[0].mxu0
    %1134 = vdwg.mxu0
    %1135 = vmatprep.subr.bf16.mxu0 %v1033
    %1136 = vmatpush1.bf16.msra.mxu0 %v1032
    %1137 = vmatprep.subr.bf16.mxu0 %v1037
    %1138 = vmatpush1.bf16.msra.mxu0 %v1036
    %1139 = vmatprep.subr.bf16.mxu0 %v1041
    %1140 = vmatpush1.bf16.msra.mxu0 %v1040
    %1141 = vmatprep.subr.bf16.mxu0 %v1045
    %1142 = vmatpush1.bf16.msra.mxu0 %v1044
    %1143 = vmatprep.subr.bf16.mxu0 %v1049
    %1144 = vmatpush1.bf16.msra.mxu0 %v1048
    %1145 = vmatprep.subr.bf16.mxu0 %v1053
    %1146 = vmatpush1.bf16.msra.mxu0 %v1052
    %1147 = vmatprep.subr.bf16.mxu0 %v1057
    %1148 = vmatpush1.bf16.msra.mxu0 %v1056
    %1149 = vmatprep.subr.bf16.mxu0 %v1061
    %1150 = vmatpush1.bf16.msra.mxu0 %v1060
    %1151 = vmatprep.subr.bf16.mxu0 0
    %1152 = vmatpush1.bf16.msra.mxu0 0
    %1153 = vmatprep.subr.bf16.mxu0 0
    %1154 = vmatpush1.bf16.msra.mxu0 0
    %1155 = vmatprep.subr.bf16.mxu0 0
    %1156 = vmatpush1.bf16.msra.mxu0 0
    %1157 = vmatprep.subr.bf16.mxu0 0
    %1158 = vmatpush1.bf16.msra.mxu0 0
    %1159 = vmatprep.subr.bf16.mxu0 0
    %1160 = vmatpush1.bf16.msra.mxu0 0
    %1161 = vmatprep.subr.bf16.mxu0 0
    %1162 = vmatpush1.bf16.msra.mxu0 0
    %1163 = vmatprep.subr.bf16.mxu0 0
    %1164 = vmatpush1.bf16.msra.mxu0 0
    %1165 = vmatprep.subr.bf16.mxu0 0
    %1166 = vmatpush1.bf16.msra.mxu0 0
    %1167 = vmatprep.mubr.bf16.mxu0 0
    %1168 = vmatmul.mubr.bf16.gmra.mrb[0].mxu0 %v901
    %v1169 = vpop.f32.mrb[0].mxu0
    %v1170 = vadd.f32 0.0, %v1169
    %v1171 = vpop.f32.mrb[0].mxu0
    %v1172 = vadd.f32 0.0, %v1171
    %v1173 = vpop.f32.mrb[0].mxu0
    %v1174 = vpop.f32.mrb[0].mxu0
    %1175 = vdwg.mxu0
    %v1180 = vcombine.low %v1129, %v1131
    %v1181 = vcombine.low %v1170, %v1172
    %v1183 = vunpack.c.l.s4 1966171168
    %v1184 = vunpack.c.0.s8 %v1183
    %v1185 = vlaneseq
    %v1186 = vshrl.u32 %v1185, 7
    %v1187 = vsub.s32 %v1184, %v1186
    %v1188 = vrot.slane %v1180, %v1187
    %v1190 = vunpack.c.l.s4 1966171168
    %v1191 = vunpack.c.0.s8 %v1190
    %v1192 = vlaneseq
    %v1193 = vshrl.u32 %v1192, 7
    %v1194 = vsub.s32 %v1191, %v1193
    %v1195 = vrot.slane %v1181, %v1194
    %v1196 = vcombine.low %v1188, %v1195
    %v1198 = vunpack.c.l.s4 1966171168
    %v1199 = vunpack.c.0.s8 %v1198
    %v1200 = vlaneseq
    %v1201 = vshrl.u32 %v1200, 7
    %v1202 = vsub.s32 %v1199, %v1201
    %v1203 = vrot.slane %v1196, %v1202
    %v1205 = vadd.f32 %v900, %v1203
    %v1206 = vtanh.pop %v1205
    %v1207 = vmul.f32 %v1206, %v233
    %v1208 = vadd.f32 %v1207, %v234
    %v1210 = vrot.slane %v1208, 1
    %v1212 = vmul.f32 %v1210, %v892
    %v1213 = vrot.slane %v1208, 3
    %v1215 = vmul.f32 %v1208, %v1213
    %v1216 = vadd.f32 %v1212, %v1215
    %v1217 = vtanh.pop %v1216
    %v1218 = vrot.slane %v1208, 2
    %v1220 = vmul.f32 %v1218, %v1217
    %1221 = vst.msk [vmem:[#allocation3 + $0x3] sm:$0x1] %vm247, %v1220
    %1222 = vst.msk [vmem:[#allocation3 + $0x4] sm:$0x1] %vm249, %v1220
    %s1223 = scalar_lea.vmem [#allocation2], 4
    %v1224 = vld [vmem:[%s1223] ss:$8 sm:$0xf]
    %v1225 = vpack.c.bf16 %v1220, %v1220
    %v1226 = vld [vmem:[#allocation7] sm:$0xff]
    %v1227 = vld [vmem:[#allocation7 + $0x8] sm:$0xff]
    %v1228 = vld [vmem:[#allocation7 + $0x10] sm:$0xff]
    %v1229 = vld [vmem:[#allocation7 + $0x18] sm:$0xff]
    %v1230 = vld [vmem:[#allocation7 + $0x20] sm:$0xff]
    %v1231 = vld [vmem:[#allocation7 + $0x28] sm:$0xff]
    %v1232 = vld [vmem:[#allocation7 + $0x30] sm:$0xff]
    %v1233 = vld [vmem:[#allocation7 + $0x38] sm:$0xff]
    %v1234 = vld [vmem:[#allocation7 + $0x40] sm:$0xff]
    %v1235 = vld [vmem:[#allocation7 + $0x48] sm:$0xff]
    %v1236 = vld [vmem:[#allocation7 + $0x50] sm:$0xff]
    %v1237 = vld [vmem:[#allocation7 + $0x58] sm:$0xff]
    %v1238 = vld [vmem:[#allocation7 + $0x60] sm:$0xff]
    %v1239 = vld [vmem:[#allocation7 + $0x68] sm:$0xff]
    %v1240 = vld [vmem:[#allocation7 + $0x70] sm:$0xff]
    %v1241 = vld [vmem:[#allocation7 + $0x78] sm:$0xff]
    %v1242 = vld [vmem:[#allocation7 + $0x80] sm:$0xff]
    %v1243 = vld [vmem:[#allocation7 + $0x88] sm:$0xff]
    %v1244 = vld [vmem:[#allocation7 + $0x90] sm:$0xff]
    %v1245 = vld [vmem:[#allocation7 + $0x98] sm:$0xff]
    %v1246 = vld [vmem:[#allocation7 + $0xa0] sm:$0xff]
    %v1247 = vld [vmem:[#allocation7 + $0xa8] sm:$0xff]
    %v1248 = vld [vmem:[#allocation7 + $0xb0] sm:$0xff]
    %v1249 = vld [vmem:[#allocation7 + $0xb8] sm:$0xff]
    %v1250 = vld [vmem:[#allocation7 + $0xc0] sm:$0xff]
    %v1251 = vld [vmem:[#allocation7 + $0xc8] sm:$0xff]
    %v1252 = vld [vmem:[#allocation7 + $0xd0] sm:$0xff]
    %v1253 = vld [vmem:[#allocation7 + $0xd8] sm:$0xff]
    %v1254 = vld [vmem:[#allocation7 + $0xe0] sm:$0xff]
    %v1255 = vld [vmem:[#allocation7 + $0xe8] sm:$0xff]
    %v1256 = vld [vmem:[#allocation7 + $0xf0] sm:$0xff]
    %v1257 = vld [vmem:[#allocation7 + $0xf8] sm:$0xff]
    %v1290 = vunpack.c.l.b16 %v1226
    %v1291 = vunpack.c.h.b16 %v1226
    %v1292 = vunpack.c.l.b16 %v1227
    %v1293 = vunpack.c.h.b16 %v1227
    %v1294 = vunpack.c.l.b16 %v1228
    %v1295 = vunpack.c.h.b16 %v1228
    %v1296 = vunpack.c.l.b16 %v1229
    %v1297 = vunpack.c.h.b16 %v1229
    %v1298 = vunpack.c.l.b16 %v1230
    %v1299 = vunpack.c.h.b16 %v1230
    %v1300 = vunpack.c.l.b16 %v1231
    %v1301 = vunpack.c.h.b16 %v1231
    %v1302 = vunpack.c.l.b16 %v1232
    %v1303 = vunpack.c.h.b16 %v1232
    %v1304 = vunpack.c.l.b16 %v1233
    %v1305 = vunpack.c.h.b16 %v1233
    %v1306 = vunpack.c.l.b16 %v1234
    %v1307 = vunpack.c.h.b16 %v1234
    %v1308 = vunpack.c.l.b16 %v1235
    %v1309 = vunpack.c.h.b16 %v1235
    %v1310 = vunpack.c.l.b16 %v1236
    %v1311 = vunpack.c.h.b16 %v1236
    %v1312 = vunpack.c.l.b16 %v1237
    %v1313 = vunpack.c.h.b16 %v1237
    %v1314 = vunpack.c.l.b16 %v1238
    %v1315 = vunpack.c.h.b16 %v1238
    %v1316 = vunpack.c.l.b16 %v1239
    %v1317 = vunpack.c.h.b16 %v1239
    %v1318 = vunpack.c.l.b16 %v1240
    %v1319 = vunpack.c.h.b16 %v1240
    %v1320 = vunpack.c.l.b16 %v1241
    %v1321 = vunpack.c.h.b16 %v1241
    %v1322 = vunpack.c.l.b16 %v1242
    %v1323 = vunpack.c.h.b16 %v1242
    %v1324 = vunpack.c.l.b16 %v1243
    %v1325 = vunpack.c.h.b16 %v1243
    %v1326 = vunpack.c.l.b16 %v1244
    %v1327 = vunpack.c.h.b16 %v1244
    %v1328 = vunpack.c.l.b16 %v1245
    %v1329 = vunpack.c.h.b16 %v1245
    %v1330 = vunpack.c.l.b16 %v1246
    %v1331 = vunpack.c.h.b16 %v1246
    %v1332 = vunpack.c.l.b16 %v1247
    %v1333 = vunpack.c.h.b16 %v1247
    %v1334 = vunpack.c.l.b16 %v1248
    %v1335 = vunpack.c.h.b16 %v1248
    %v1336 = vunpack.c.l.b16 %v1249
    %v1337 = vunpack.c.h.b16 %v1249
    %v1338 = vunpack.c.l.b16 %v1250
    %v1339 = vunpack.c.h.b16 %v1250
    %v1340 = vunpack.c.l.b16 %v1251
    %v1341 = vunpack.c.h.b16 %v1251
    %v1342 = vunpack.c.l.b16 %v1252
    %v1343 = vunpack.c.h.b16 %v1252
    %v1344 = vunpack.c.l.b16 %v1253
    %v1345 = vunpack.c.h.b16 %v1253
    %v1346 = vunpack.c.l.b16 %v1254
    %v1347 = vunpack.c.h.b16 %v1254
    %v1348 = vunpack.c.l.b16 %v1255
    %v1349 = vunpack.c.h.b16 %v1255
    %v1350 = vunpack.c.l.b16 %v1256
    %v1351 = vunpack.c.h.b16 %v1256
    %v1352 = vunpack.c.l.b16 %v1257
    %v1353 = vunpack.c.h.b16 %v1257
    %v1354 = vpack.c.b16 %v1294, %v1290
    %v1355 = vpack.c.b16 %v1295, %v1291
    %v1356 = vpack.c.b16 %v1296, %v1292
    %v1357 = vpack.c.b16 %v1297, %v1293
    %v1358 = vpack.c.b16 %v1302, %v1298
    %v1359 = vpack.c.b16 %v1303, %v1299
    %v1360 = vpack.c.b16 %v1304, %v1300
    %v1361 = vpack.c.b16 %v1305, %v1301
    %v1362 = vpack.c.b16 %v1310, %v1306
    %v1363 = vpack.c.b16 %v1311, %v1307
    %v1364 = vpack.c.b16 %v1312, %v1308
    %v1365 = vpack.c.b16 %v1313, %v1309
    %v1366 = vpack.c.b16 %v1318, %v1314
    %v1367 = vpack.c.b16 %v1319, %v1315
    %v1368 = vpack.c.b16 %v1320, %v1316
    %v1369 = vpack.c.b16 %v1321, %v1317
    %v1370 = vpack.c.b16 %v1326, %v1322
    %v1371 = vpack.c.b16 %v1327, %v1323
    %v1372 = vpack.c.b16 %v1328, %v1324
    %v1373 = vpack.c.b16 %v1329, %v1325
    %v1374 = vpack.c.b16 %v1334, %v1330
    %v1375 = vpack.c.b16 %v1335, %v1331
    %v1376 = vpack.c.b16 %v1336, %v1332
    %v1377 = vpack.c.b16 %v1337, %v1333
    %v1378 = vpack.c.b16 %v1342, %v1338
    %v1379 = vpack.c.b16 %v1343, %v1339
    %v1380 = vpack.c.b16 %v1344, %v1340
    %v1381 = vpack.c.b16 %v1345, %v1341
    %v1382 = vpack.c.b16 %v1350, %v1346
    %v1383 = vpack.c.b16 %v1351, %v1347
    %v1384 = vpack.c.b16 %v1352, %v1348
    %v1385 = vpack.c.b16 %v1353, %v1349
    %1418 = vmatprep.subr.bf16.mxu0 %v1355
    %1419 = vmatpush1.bf16.msra.mxu0 %v1354
    %1420 = vmatprep.subr.bf16.mxu0 %v1359
    %1421 = vmatpush1.bf16.msra.mxu0 %v1358
    %1422 = vmatprep.subr.bf16.mxu0 %v1363
    %1423 = vmatpush1.bf16.msra.mxu0 %v1362
    %1424 = vmatprep.subr.bf16.mxu0 %v1367
    %1425 = vmatpush1.bf16.msra.mxu0 %v1366
    %1426 = vmatprep.subr.bf16.mxu0 %v1371
    %1427 = vmatpush1.bf16.msra.mxu0 %v1370
    %1428 = vmatprep.subr.bf16.mxu0 %v1375
    %1429 = vmatpush1.bf16.msra.mxu0 %v1374
    %1430 = vmatprep.subr.bf16.mxu0 %v1379
    %1431 = vmatpush1.bf16.msra.mxu0 %v1378
    %1432 = vmatprep.subr.bf16.mxu0 %v1383
    %1433 = vmatpush1.bf16.msra.mxu0 %v1382
    %1434 = vmatprep.subr.bf16.mxu0 0
    %1435 = vmatpush1.bf16.msra.mxu0 0
    %1436 = vmatprep.subr.bf16.mxu0 0
    %1437 = vmatpush1.bf16.msra.mxu0 0
    %1438 = vmatprep.subr.bf16.mxu0 0
    %1439 = vmatpush1.bf16.msra.mxu0 0
    %1440 = vmatprep.subr.bf16.mxu0 0
    %1441 = vmatpush1.bf16.msra.mxu0 0
    %1442 = vmatprep.subr.bf16.mxu0 0
    %1443 = vmatpush1.bf16.msra.mxu0 0
    %1444 = vmatprep.subr.bf16.mxu0 0
    %1445 = vmatpush1.bf16.msra.mxu0 0
    %1446 = vmatprep.subr.bf16.mxu0 0
    %1447 = vmatpush1.bf16.msra.mxu0 0
    %1448 = vmatprep.subr.bf16.mxu0 0
    %1449 = vmatpush1.bf16.msra.mxu0 0
    %1450 = vmatprep.mubr.bf16.mxu0 0
    %1451 = vmatmul.mubr.bf16.gmra.mrb[0].mxu0 %v1225
    %v1452 = vpop.f32.mrb[0].mxu0
    %v1453 = vadd.f32 0.0, %v1452
    %v1454 = vpop.f32.mrb[0].mxu0
    %v1455 = vadd.f32 0.0, %v1454
    %v1456 = vpop.f32.mrb[0].mxu0
    %v1457 = vpop.f32.mrb[0].mxu0
    %1458 = vdwg.mxu0
    %1459 = vmatprep.subr.bf16.mxu0 %v1357
    %1460 = vmatpush1.bf16.msra.mxu0 %v1356
    %1461 = vmatprep.subr.bf16.mxu0 %v1361
    %1462 = vmatpush1.bf16.msra.mxu0 %v1360
    %1463 = vmatprep.subr.bf16.mxu0 %v1365
    %1464 = vmatpush1.bf16.msra.mxu0 %v1364
    %1465 = vmatprep.subr.bf16.mxu0 %v1369
    %1466 = vmatpush1.bf16.msra.mxu0 %v1368
    %1467 = vmatprep.subr.bf16.mxu0 %v1373
    %1468 = vmatpush1.bf16.msra.mxu0 %v1372
    %1469 = vmatprep.subr.bf16.mxu0 %v1377
    %1470 = vmatpush1.bf16.msra.mxu0 %v1376
    %1471 = vmatprep.subr.bf16.mxu0 %v1381
    %1472 = vmatpush1.bf16.msra.mxu0 %v1380
    %1473 = vmatprep.subr.bf16.mxu0 %v1385
    %1474 = vmatpush1.bf16.msra.mxu0 %v1384
    %1475 = vmatprep.subr.bf16.mxu0 0
    %1476 = vmatpush1.bf16.msra.mxu0 0
    %1477 = vmatprep.subr.bf16.mxu0 0
    %1478 = vmatpush1.bf16.msra.mxu0 0
    %1479 = vmatprep.subr.bf16.mxu0 0
    %1480 = vmatpush1.bf16.msra.mxu0 0
    %1481 = vmatprep.subr.bf16.mxu0 0
    %1482 = vmatpush1.bf16.msra.mxu0 0
    %1483 = vmatprep.subr.bf16.mxu0 0
    %1484 = vmatpush1.bf16.msra.mxu0 0
    %1485 = vmatprep.subr.bf16.mxu0 0
    %1486 = vmatpush1.bf16.msra.mxu0 0
    %1487 = vmatprep.subr.bf16.mxu0 0
    %1488 = vmatpush1.bf16.msra.mxu0 0
    %1489 = vmatprep.subr.bf16.mxu0 0
    %1490 = vmatpush1.bf16.msra.mxu0 0
    %1491 = vmatprep.mubr.bf16.mxu0 0
    %1492 = vmatmul.mubr.bf16.gmra.mrb[0].mxu0 %v1225
    %v1493 = vpop.f32.mrb[0].mxu0
    %v1494 = vadd.f32 0.0, %v1493
    %v1495 = vpop.f32.mrb[0].mxu0
    %v1496 = vadd.f32 0.0, %v1495
    %v1497 = vpop.f32.mrb[0].mxu0
    %v1498 = vpop.f32.mrb[0].mxu0
    %1499 = vdwg.mxu0
    %v1504 = vcombine.low %v1453, %v1455
    %v1505 = vcombine.low %v1494, %v1496
    %v1507 = vunpack.c.l.s4 1966171168
    %v1508 = vunpack.c.0.s8 %v1507
    %v1509 = vlaneseq
    %v1510 = vshrl.u32 %v1509, 7
    %v1511 = vsub.s32 %v1508, %v1510
    %v1512 = vrot.slane %v1504, %v1511
    %v1514 = vunpack.c.l.s4 1966171168
    %v1515 = vunpack.c.0.s8 %v1514
    %v1516 = vlaneseq
    %v1517 = vshrl.u32 %v1516, 7
    %v1518 = vsub.s32 %v1515, %v1517
    %v1519 = vrot.slane %v1505, %v1518
    %v1520 = vcombine.low %v1512, %v1519
    %v1522 = vunpack.c.l.s4 1966171168
    %v1523 = vunpack.c.0.s8 %v1522
    %v1524 = vlaneseq
    %v1525 = vshrl.u32 %v1524, 7
    %v1526 = vsub.s32 %v1523, %v1525
    %v1527 = vrot.slane %v1520, %v1526
    %v1529 = vadd.f32 %v1224, %v1527
    %v1530 = vtanh.pop %v1529
    %v1531 = vmul.f32 %v1530, %v233
    %v1532 = vadd.f32 %v1531, %v234
    %v1534 = vrot.slane %v1532, 1
    %v1536 = vmul.f32 %v1534, %v1216
    %v1537 = vrot.slane %v1532, 3
    %v1539 = vmul.f32 %v1532, %v1537
    %v1540 = vadd.f32 %v1536, %v1539
    %v1541 = vtanh.pop %v1540
    %v1542 = vrot.slane %v1532, 2
    %v1544 = vmul.f32 %v1542, %v1541
    %1545 = vst.msk [vmem:[#allocation3 + $0x4] sm:$0x1] %vm247, %v1544
    %1546 = vst.msk [vmem:[#allocation3 + $0x3] sm:$0x1] %vm249, %v1544
    %s1547 = scalar_lea.vmem [#allocation2], 5
    %v1548 = vld [vmem:[%s1547] ss:$8 sm:$0xf]
    %v1549 = vpack.c.bf16 %v1544, %v1544
    %v1550 = vld [vmem:[#allocation7] sm:$0xff]
    %v1551 = vld [vmem:[#allocation7 + $0x8] sm:$0xff]
    %v1552 = vld [vmem:[#allocation7 + $0x10] sm:$0xff]
    %v1553 = vld [vmem:[#allocation7 + $0x18] sm:$0xff]
    %v1554 = vld [vmem:[#allocation7 + $0x20] sm:$0xff]
    %v1555 = vld [vmem:[#allocation7 + $0x28] sm:$0xff]
    %v1556 = vld [vmem:[#allocation7 + $0x30] sm:$0xff]
    %v1557 = vld [vmem:[#allocation7 + $0x38] sm:$0xff]
    %v1558 = vld [vmem:[#allocation7 + $0x40] sm:$0xff]
    %v1559 = vld [vmem:[#allocation7 + $0x48] sm:$0xff]
    %v1560 = vld [vmem:[#allocation7 + $0x50] sm:$0xff]
    %v1561 = vld [vmem:[#allocation7 + $0x58] sm:$0xff]
    %v1562 = vld [vmem:[#allocation7 + $0x60] sm:$0xff]
    %v1563 = vld [vmem:[#allocation7 + $0x68] sm:$0xff]
    %v1564 = vld [vmem:[#allocation7 + $0x70] sm:$0xff]
    %v1565 = vld [vmem:[#allocation7 + $0x78] sm:$0xff]
    %v1566 = vld [vmem:[#allocation7 + $0x80] sm:$0xff]
    %v1567 = vld [vmem:[#allocation7 + $0x88] sm:$0xff]
    %v1568 = vld [vmem:[#allocation7 + $0x90] sm:$0xff]
    %v1569 = vld [vmem:[#allocation7 + $0x98] sm:$0xff]
    %v1570 = vld [vmem:[#allocation7 + $0xa0] sm:$0xff]
    %v1571 = vld [vmem:[#allocation7 + $0xa8] sm:$0xff]
    %v1572 = vld [vmem:[#allocation7 + $0xb0] sm:$0xff]
    %v1573 = vld [vmem:[#allocation7 + $0xb8] sm:$0xff]
    %v1574 = vld [vmem:[#allocation7 + $0xc0] sm:$0xff]
    %v1575 = vld [vmem:[#allocation7 + $0xc8] sm:$0xff]
    %v1576 = vld [vmem:[#allocation7 + $0xd0] sm:$0xff]
    %v1577 = vld [vmem:[#allocation7 + $0xd8] sm:$0xff]
    %v1578 = vld [vmem:[#allocation7 + $0xe0] sm:$0xff]
    %v1579 = vld [vmem:[#allocation7 + $0xe8] sm:$0xff]
    %v1580 = vld [vmem:[#allocation7 + $0xf0] sm:$0xff]
    %v1581 = vld [vmem:[#allocation7 + $0xf8] sm:$0xff]
    %v1614 = vunpack.c.l.b16 %v1550
    %v1615 = vunpack.c.h.b16 %v1550
    %v1616 = vunpack.c.l.b16 %v1551
    %v1617 = vunpack.c.h.b16 %v1551
    %v1618 = vunpack.c.l.b16 %v1552
    %v1619 = vunpack.c.h.b16 %v1552
    %v1620 = vunpack.c.l.b16 %v1553
    %v1621 = vunpack.c.h.b16 %v1553
    %v1622 = vunpack.c.l.b16 %v1554
    %v1623 = vunpack.c.h.b16 %v1554
    %v1624 = vunpack.c.l.b16 %v1555
    %v1625 = vunpack.c.h.b16 %v1555
    %v1626 = vunpack.c.l.b16 %v1556
    %v1627 = vunpack.c.h.b16 %v1556
    %v1628 = vunpack.c.l.b16 %v1557
    %v1629 = vunpack.c.h.b16 %v1557
    %v1630 = vunpack.c.l.b16 %v1558
    %v1631 = vunpack.c.h.b16 %v1558
    %v1632 = vunpack.c.l.b16 %v1559
    %v1633 = vunpack.c.h.b16 %v1559
    %v1634 = vunpack.c.l.b16 %v1560
    %v1635 = vunpack.c.h.b16 %v1560
    %v1636 = vunpack.c.l.b16 %v1561
    %v1637 = vunpack.c.h.b16 %v1561
    %v1638 = vunpack.c.l.b16 %v1562
    %v1639 = vunpack.c.h.b16 %v1562
    %v1640 = vunpack.c.l.b16 %v1563
    %v1641 = vunpack.c.h.b16 %v1563
    %v1642 = vunpack.c.l.b16 %v1564
    %v1643 = vunpack.c.h.b16 %v1564
    %v1644 = vunpack.c.l.b16 %v1565
    %v1645 = vunpack.c.h.b16 %v1565
    %v1646 = vunpack.c.l.b16 %v1566
    %v1647 = vunpack.c.h.b16 %v1566
    %v1648 = vunpack.c.l.b16 %v1567
    %v1649 = vunpack.c.h.b16 %v1567
    %v1650 = vunpack.c.l.b16 %v1568
    %v1651 = vunpack.c.h.b16 %v1568
    %v1652 = vunpack.c.l.b16 %v1569
    %v1653 = vunpack.c.h.b16 %v1569
    %v1654 = vunpack.c.l.b16 %v1570
    %v1655 = vunpack.c.h.b16 %v1570
    %v1656 = vunpack.c.l.b16 %v1571
    %v1657 = vunpack.c.h.b16 %v1571
    %v1658 = vunpack.c.l.b16 %v1572
    %v1659 = vunpack.c.h.b16 %v1572
    %v1660 = vunpack.c.l.b16 %v1573
    %v1661 = vunpack.c.h.b16 %v1573
    %v1662 = vunpack.c.l.b16 %v1574
    %v1663 = vunpack.c.h.b16 %v1574
    %v1664 = vunpack.c.l.b16 %v1575
    %v1665 = vunpack.c.h.b16 %v1575
    %v1666 = vunpack.c.l.b16 %v1576
    %v1667 = vunpack.c.h.b16 %v1576
    %v1668 = vunpack.c.l.b16 %v1577
    %v1669 = vunpack.c.h.b16 %v1577
    %v1670 = vunpack.c.l.b16 %v1578
    %v1671 = vunpack.c.h.b16 %v1578
    %v1672 = vunpack.c.l.b16 %v1579
    %v1673 = vunpack.c.h.b16 %v1579
    %v1674 = vunpack.c.l.b16 %v1580
    %v1675 = vunpack.c.h.b16 %v1580
    %v1676 = vunpack.c.l.b16 %v1581
    %v1677 = vunpack.c.h.b16 %v1581
    %v1678 = vpack.c.b16 %v1618, %v1614
    %v1679 = vpack.c.b16 %v1619, %v1615
    %v1680 = vpack.c.b16 %v1620, %v1616
    %v1681 = vpack.c.b16 %v1621, %v1617
    %v1682 = vpack.c.b16 %v1626, %v1622
    %v1683 = vpack.c.b16 %v1627, %v1623
    %v1684 = vpack.c.b16 %v1628, %v1624
    %v1685 = vpack.c.b16 %v1629, %v1625
    %v1686 = vpack.c.b16 %v1634, %v1630
    %v1687 = vpack.c.b16 %v1635, %v1631
    %v1688 = vpack.c.b16 %v1636, %v1632
    %v1689 = vpack.c.b16 %v1637, %v1633
    %v1690 = vpack.c.b16 %v1642, %v1638
    %v1691 = vpack.c.b16 %v1643, %v1639
    %v1692 = vpack.c.b16 %v1644, %v1640
    %v1693 = vpack.c.b16 %v1645, %v1641
    %v1694 = vpack.c.b16 %v1650, %v1646
    %v1695 = vpack.c.b16 %v1651, %v1647
    %v1696 = vpack.c.b16 %v1652, %v1648
    %v1697 = vpack.c.b16 %v1653, %v1649
    %v1698 = vpack.c.b16 %v1658, %v1654
    %v1699 = vpack.c.b16 %v1659, %v1655
    %v1700 = vpack.c.b16 %v1660, %v1656
    %v1701 = vpack.c.b16 %v1661, %v1657
    %v1702 = vpack.c.b16 %v1666, %v1662
    %v1703 = vpack.c.b16 %v1667, %v1663
    %v1704 = vpack.c.b16 %v1668, %v1664
    %v1705 = vpack.c.b16 %v1669, %v1665
    %v1706 = vpack.c.b16 %v1674, %v1670
    %v1707 = vpack.c.b16 %v1675, %v1671
    %v1708 = vpack.c.b16 %v1676, %v1672
    %v1709 = vpack.c.b16 %v1677, %v1673
    %1742 = vmatprep.subr.bf16.mxu0 %v1679
    %1743 = vmatpush1.bf16.msra.mxu0 %v1678
    %1744 = vmatprep.subr.bf16.mxu0 %v1683
    %1745 = vmatpush1.bf16.msra.mxu0 %v1682
    %1746 = vmatprep.subr.bf16.mxu0 %v1687
    %1747 = vmatpush1.bf16.msra.mxu0 %v1686
    %1748 = vmatprep.subr.bf16.mxu0 %v1691
    %1749 = vmatpush1.bf16.msra.mxu0 %v1690
    %1750 = vmatprep.subr.bf16.mxu0 %v1695
    %1751 = vmatpush1.bf16.msra.mxu0 %v1694
    %1752 = vmatprep.subr.bf16.mxu0 %v1699
    %1753 = vmatpush1.bf16.msra.mxu0 %v1698
    %1754 = vmatprep.subr.bf16.mxu0 %v1703
    %1755 = vmatpush1.bf16.msra.mxu0 %v1702
    %1756 = vmatprep.subr.bf16.mxu0 %v1707
    %1757 = vmatpush1.bf16.msra.mxu0 %v1706
    %1758 = vmatprep.subr.bf16.mxu0 0
    %1759 = vmatpush1.bf16.msra.mxu0 0
    %1760 = vmatprep.subr.bf16.mxu0 0
    %1761 = vmatpush1.bf16.msra.mxu0 0
    %1762 = vmatprep.subr.bf16.mxu0 0
    %1763 = vmatpush1.bf16.msra.mxu0 0
    %1764 = vmatprep.subr.bf16.mxu0 0
    %1765 = vmatpush1.bf16.msra.mxu0 0
    %1766 = vmatprep.subr.bf16.mxu0 0
    %1767 = vmatpush1.bf16.msra.mxu0 0
    %1768 = vmatprep.subr.bf16.mxu0 0
    %1769 = vmatpush1.bf16.msra.mxu0 0
    %1770 = vmatprep.subr.bf16.mxu0 0
    %1771 = vmatpush1.bf16.msra.mxu0 0
    %1772 = vmatprep.subr.bf16.mxu0 0
    %1773 = vmatpush1.bf16.msra.mxu0 0
    %1774 = vmatprep.mubr.bf16.mxu0 0
    %1775 = vmatmul.mubr.bf16.gmra.mrb[0].mxu0 %v1549
    %v1776 = vpop.f32.mrb[0].mxu0
    %v1777 = vadd.f32 0.0, %v1776
    %v1778 = vpop.f32.mrb[0].mxu0
    %v1779 = vadd.f32 0.0, %v1778
    %v1780 = vpop.f32.mrb[0].mxu0
    %v1781 = vpop.f32.mrb[0].mxu0
    %1782 = vdwg.mxu0
    %1783 = vmatprep.subr.bf16.mxu0 %v1681
    %1784 = vmatpush1.bf16.msra.mxu0 %v1680
    %1785 = vmatprep.subr.bf16.mxu0 %v1685
    %1786 = vmatpush1.bf16.msra.mxu0 %v1684
    %1787 = vmatprep.subr.bf16.mxu0 %v1689
    %1788 = vmatpush1.bf16.msra.mxu0 %v1688
    %1789 = vmatprep.subr.bf16.mxu0 %v1693
    %1790 = vmatpush1.bf16.msra.mxu0 %v1692
    %1791 = vmatprep.subr.bf16.mxu0 %v1697
    %1792 = vmatpush1.bf16.msra.mxu0 %v1696
    %1793 = vmatprep.subr.bf16.mxu0 %v1701
    %1794 = vmatpush1.bf16.msra.mxu0 %v1700
    %1795 = vmatprep.subr.bf16.mxu0 %v1705
    %1796 = vmatpush1.bf16.msra.mxu0 %v1704
    %1797 = vmatprep.subr.bf16.mxu0 %v1709
    %1798 = vmatpush1.bf16.msra.mxu0 %v1708
    %1799 = vmatprep.subr.bf16.mxu0 0
    %1800 = vmatpush1.bf16.msra.mxu0 0
    %1801 = vmatprep.subr.bf16.mxu0 0
    %1802 = vmatpush1.bf16.msra.mxu0 0
    %1803 = vmatprep.subr.bf16.mxu0 0
    %1804 = vmatpush1.bf16.msra.mxu0 0
    %1805 = vmatprep.subr.bf16.mxu0 0
    %1806 = vmatpush1.bf16.msra.mxu0 0
    %1807 = vmatprep.subr.bf16.mxu0 0
    %1808 = vmatpush1.bf16.msra.mxu0 0
    %1809 = vmatprep.subr.bf16.mxu0 0
    %1810 = vmatpush1.bf16.msra.mxu0 0
    %1811 = vmatprep.subr.bf16.mxu0 0
    %1812 = vmatpush1.bf16.msra.mxu0 0
    %1813 = vmatprep.subr.bf16.mxu0 0
    %1814 = vmatpush1.bf16.msra.mxu0 0
    %1815 = vmatprep.mubr.bf16.mxu0 0
    %1816 = vmatmul.mubr.bf16.gmra.mrb[0].mxu0 %v1549
    %v1817 = vpop.f32.mrb[0].mxu0
    %v1818 = vadd.f32 0.0, %v1817
    %v1819 = vpop.f32.mrb[0].mxu0
    %v1820 = vadd.f32 0.0, %v1819
    %v1821 = vpop.f32.mrb[0].mxu0
    %v1822 = vpop.f32.mrb[0].mxu0
    %1823 = vdwg.mxu0
    %v1828 = vcombine.low %v1777, %v1779
    %v1829 = vcombine.low %v1818, %v1820
    %v1831 = vunpack.c.l.s4 1966171168
    %v1832 = vunpack.c.0.s8 %v1831
    %v1833 = vlaneseq
    %v1834 = vshrl.u32 %v1833, 7
    %v1835 = vsub.s32 %v1832, %v1834
    %v1836 = vrot.slane %v1828, %v1835
    %v1838 = vunpack.c.l.s4 1966171168
    %v1839 = vunpack.c.0.s8 %v1838
    %v1840 = vlaneseq
    %v1841 = vshrl.u32 %v1840, 7
    %v1842 = vsub.s32 %v1839, %v1841
    %v1843 = vrot.slane %v1829, %v1842
    %v1844 = vcombine.low %v1836, %v1843
    %v1846 = vunpack.c.l.s4 1966171168
    %v1847 = vunpack.c.0.s8 %v1846
    %v1848 = vlaneseq
    %v1849 = vshrl.u32 %v1848, 7
    %v1850 = vsub.s32 %v1847, %v1849
    %v1851 = vrot.slane %v1844, %v1850
    %v1853 = vadd.f32 %v1548, %v1851
    %v1854 = vtanh.pop %v1853
    %v1855 = vmul.f32 %v1854, %v233
    %v1856 = vadd.f32 %v1855, %v234
    %v1858 = vrot.slane %v1856, 1
    %v1860 = vmul.f32 %v1858, %v1540
    %v1861 = vrot.slane %v1856, 3
    %v1863 = vmul.f32 %v1856, %v1861
    %v1864 = vadd.f32 %v1860, %v1863
    %v1865 = vtanh.pop %v1864
    %v1866 = vrot.slane %v1856, 2
    %v1868 = vmul.f32 %v1866, %v1865
    %1869 = vst.msk [vmem:[#allocation3 + $0x5] sm:$0x1] %vm247, %v1868
    %1870 = vst.msk [vmem:[#allocation3 + $0x2] sm:$0x1] %vm249, %v1868
    %s1871 = scalar_lea.vmem [#allocation2], 6
    %v1872 = vld [vmem:[%s1871] ss:$8 sm:$0xf]
    %v1873 = vpack.c.bf16 %v1868, %v1868
    %v1874 = vld [vmem:[#allocation7] sm:$0xff]
    %v1875 = vld [vmem:[#allocation7 + $0x8] sm:$0xff]
    %v1876 = vld [vmem:[#allocation7 + $0x10] sm:$0xff]
    %v1877 = vld [vmem:[#allocation7 + $0x18] sm:$0xff]
    %v1878 = vld [vmem:[#allocation7 + $0x20] sm:$0xff]
    %v1879 = vld [vmem:[#allocation7 + $0x28] sm:$0xff]
    %v1880 = vld [vmem:[#allocation7 + $0x30] sm:$0xff]
    %v1881 = vld [vmem:[#allocation7 + $0x38] sm:$0xff]
    %v1882 = vld [vmem:[#allocation7 + $0x40] sm:$0xff]
    %v1883 = vld [vmem:[#allocation7 + $0x48] sm:$0xff]
    %v1884 = vld [vmem:[#allocation7 + $0x50] sm:$0xff]
    %v1885 = vld [vmem:[#allocation7 + $0x58] sm:$0xff]
    %v1886 = vld [vmem:[#allocation7 + $0x60] sm:$0xff]
    %v1887 = vld [vmem:[#allocation7 + $0x68] sm:$0xff]
    %v1888 = vld [vmem:[#allocation7 + $0x70] sm:$0xff]
    %v1889 = vld [vmem:[#allocation7 + $0x78] sm:$0xff]
    %v1890 = vld [vmem:[#allocation7 + $0x80] sm:$0xff]
    %v1891 = vld [vmem:[#allocation7 + $0x88] sm:$0xff]
    %v1892 = vld [vmem:[#allocation7 + $0x90] sm:$0xff]
    %v1893 = vld [vmem:[#allocation7 + $0x98] sm:$0xff]
    %v1894 = vld [vmem:[#allocation7 + $0xa0] sm:$0xff]
    %v1895 = vld [vmem:[#allocation7 + $0xa8] sm:$0xff]
    %v1896 = vld [vmem:[#allocation7 + $0xb0] sm:$0xff]
    %v1897 = vld [vmem:[#allocation7 + $0xb8] sm:$0xff]
    %v1898 = vld [vmem:[#allocation7 + $0xc0] sm:$0xff]
    %v1899 = vld [vmem:[#allocation7 + $0xc8] sm:$0xff]
    %v1900 = vld [vmem:[#allocation7 + $0xd0] sm:$0xff]
    %v1901 = vld [vmem:[#allocation7 + $0xd8] sm:$0xff]
    %v1902 = vld [vmem:[#allocation7 + $0xe0] sm:$0xff]
    %v1903 = vld [vmem:[#allocation7 + $0xe8] sm:$0xff]
    %v1904 = vld [vmem:[#allocation7 + $0xf0] sm:$0xff]
    %v1905 = vld [vmem:[#allocation7 + $0xf8] sm:$0xff]
    %v1938 = vunpack.c.l.b16 %v1874
    %v1939 = vunpack.c.h.b16 %v1874
    %v1940 = vunpack.c.l.b16 %v1875
    %v1941 = vunpack.c.h.b16 %v1875
    %v1942 = vunpack.c.l.b16 %v1876
    %v1943 = vunpack.c.h.b16 %v1876
    %v1944 = vunpack.c.l.b16 %v1877
    %v1945 = vunpack.c.h.b16 %v1877
    %v1946 = vunpack.c.l.b16 %v1878
    %v1947 = vunpack.c.h.b16 %v1878
    %v1948 = vunpack.c.l.b16 %v1879
    %v1949 = vunpack.c.h.b16 %v1879
    %v1950 = vunpack.c.l.b16 %v1880
    %v1951 = vunpack.c.h.b16 %v1880
    %v1952 = vunpack.c.l.b16 %v1881
    %v1953 = vunpack.c.h.b16 %v1881
    %v1954 = vunpack.c.l.b16 %v1882
    %v1955 = vunpack.c.h.b16 %v1882
    %v1956 = vunpack.c.l.b16 %v1883
    %v1957 = vunpack.c.h.b16 %v1883
    %v1958 = vunpack.c.l.b16 %v1884
    %v1959 = vunpack.c.h.b16 %v1884
    %v1960 = vunpack.c.l.b16 %v1885
    %v1961 = vunpack.c.h.b16 %v1885
    %v1962 = vunpack.c.l.b16 %v1886
    %v1963 = vunpack.c.h.b16 %v1886
    %v1964 = vunpack.c.l.b16 %v1887
    %v1965 = vunpack.c.h.b16 %v1887
    %v1966 = vunpack.c.l.b16 %v1888
    %v1967 = vunpack.c.h.b16 %v1888
    %v1968 = vunpack.c.l.b16 %v1889
    %v1969 = vunpack.c.h.b16 %v1889
    %v1970 = vunpack.c.l.b16 %v1890
    %v1971 = vunpack.c.h.b16 %v1890
    %v1972 = vunpack.c.l.b16 %v1891
    %v1973 = vunpack.c.h.b16 %v1891
    %v1974 = vunpack.c.l.b16 %v1892
    %v1975 = vunpack.c.h.b16 %v1892
    %v1976 = vunpack.c.l.b16 %v1893
    %v1977 = vunpack.c.h.b16 %v1893
    %v1978 = vunpack.c.l.b16 %v1894
    %v1979 = vunpack.c.h.b16 %v1894
    %v1980 = vunpack.c.l.b16 %v1895
    %v1981 = vunpack.c.h.b16 %v1895
    %v1982 = vunpack.c.l.b16 %v1896
    %v1983 = vunpack.c.h.b16 %v1896
    %v1984 = vunpack.c.l.b16 %v1897
    %v1985 = vunpack.c.h.b16 %v1897
    %v1986 = vunpack.c.l.b16 %v1898
    %v1987 = vunpack.c.h.b16 %v1898
    %v1988 = vunpack.c.l.b16 %v1899
    %v1989 = vunpack.c.h.b16 %v1899
    %v1990 = vunpack.c.l.b16 %v1900
    %v1991 = vunpack.c.h.b16 %v1900
    %v1992 = vunpack.c.l.b16 %v1901
    %v1993 = vunpack.c.h.b16 %v1901
    %v1994 = vunpack.c.l.b16 %v1902
    %v1995 = vunpack.c.h.b16 %v1902
    %v1996 = vunpack.c.l.b16 %v1903
    %v1997 = vunpack.c.h.b16 %v1903
    %v1998 = vunpack.c.l.b16 %v1904
    %v1999 = vunpack.c.h.b16 %v1904
    %v2000 = vunpack.c.l.b16 %v1905
    %v2001 = vunpack.c.h.b16 %v1905
    %v2002 = vpack.c.b16 %v1942, %v1938
    %v2003 = vpack.c.b16 %v1943, %v1939
    %v2004 = vpack.c.b16 %v1944, %v1940
    %v2005 = vpack.c.b16 %v1945, %v1941
    %v2006 = vpack.c.b16 %v1950, %v1946
    %v2007 = vpack.c.b16 %v1951, %v1947
    %v2008 = vpack.c.b16 %v1952, %v1948
    %v2009 = vpack.c.b16 %v1953, %v1949
    %v2010 = vpack.c.b16 %v1958, %v1954
    %v2011 = vpack.c.b16 %v1959, %v1955
    %v2012 = vpack.c.b16 %v1960, %v1956
    %v2013 = vpack.c.b16 %v1961, %v1957
    %v2014 = vpack.c.b16 %v1966, %v1962
    %v2015 = vpack.c.b16 %v1967, %v1963
    %v2016 = vpack.c.b16 %v1968, %v1964
    %v2017 = vpack.c.b16 %v1969, %v1965
    %v2018 = vpack.c.b16 %v1974, %v1970
    %v2019 = vpack.c.b16 %v1975, %v1971
    %v2020 = vpack.c.b16 %v1976, %v1972
    %v2021 = vpack.c.b16 %v1977, %v1973
    %v2022 = vpack.c.b16 %v1982, %v1978
    %v2023 = vpack.c.b16 %v1983, %v1979
    %v2024 = vpack.c.b16 %v1984, %v1980
    %v2025 = vpack.c.b16 %v1985, %v1981
    %v2026 = vpack.c.b16 %v1990, %v1986
    %v2027 = vpack.c.b16 %v1991, %v1987
    %v2028 = vpack.c.b16 %v1992, %v1988
    %v2029 = vpack.c.b16 %v1993, %v1989
    %v2030 = vpack.c.b16 %v1998, %v1994
    %v2031 = vpack.c.b16 %v1999, %v1995
    %v2032 = vpack.c.b16 %v2000, %v1996
    %v2033 = vpack.c.b16 %v2001, %v1997
    %2066 = vmatprep.subr.bf16.mxu0 %v2003
    %2067 = vmatpush1.bf16.msra.mxu0 %v2002
    %2068 = vmatprep.subr.bf16.mxu0 %v2007
    %2069 = vmatpush1.bf16.msra.mxu0 %v2006
    %2070 = vmatprep.subr.bf16.mxu0 %v2011
    %2071 = vmatpush1.bf16.msra.mxu0 %v2010
    %2072 = vmatprep.subr.bf16.mxu0 %v2015
    %2073 = vmatpush1.bf16.msra.mxu0 %v2014
    %2074 = vmatprep.subr.bf16.mxu0 %v2019
    %2075 = vmatpush1.bf16.msra.mxu0 %v2018
    %2076 = vmatprep.subr.bf16.mxu0 %v2023
    %2077 = vmatpush1.bf16.msra.mxu0 %v2022
    %2078 = vmatprep.subr.bf16.mxu0 %v2027
    %2079 = vmatpush1.bf16.msra.mxu0 %v2026
    %2080 = vmatprep.subr.bf16.mxu0 %v2031
    %2081 = vmatpush1.bf16.msra.mxu0 %v2030
    %2082 = vmatprep.subr.bf16.mxu0 0
    %2083 = vmatpush1.bf16.msra.mxu0 0
    %2084 = vmatprep.subr.bf16.mxu0 0
    %2085 = vmatpush1.bf16.msra.mxu0 0
    %2086 = vmatprep.subr.bf16.mxu0 0
    %2087 = vmatpush1.bf16.msra.mxu0 0
    %2088 = vmatprep.subr.bf16.mxu0 0
    %2089 = vmatpush1.bf16.msra.mxu0 0
    %2090 = vmatprep.subr.bf16.mxu0 0
    %2091 = vmatpush1.bf16.msra.mxu0 0
    %2092 = vmatprep.subr.bf16.mxu0 0
    %2093 = vmatpush1.bf16.msra.mxu0 0
    %2094 = vmatprep.subr.bf16.mxu0 0
    %2095 = vmatpush1.bf16.msra.mxu0 0
    %2096 = vmatprep.subr.bf16.mxu0 0
    %2097 = vmatpush1.bf16.msra.mxu0 0
    %2098 = vmatprep.mubr.bf16.mxu0 0
    %2099 = vmatmul.mubr.bf16.gmra.mrb[0].mxu0 %v1873
    %v2100 = vpop.f32.mrb[0].mxu0
    %v2101 = vadd.f32 0.0, %v2100
    %v2102 = vpop.f32.mrb[0].mxu0
    %v2103 = vadd.f32 0.0, %v2102
    %v2104 = vpop.f32.mrb[0].mxu0
    %v2105 = vpop.f32.mrb[0].mxu0
    %2106 = vdwg.mxu0
    %2107 = vmatprep.subr.bf16.mxu0 %v2005
    %2108 = vmatpush1.bf16.msra.mxu0 %v2004
    %2109 = vmatprep.subr.bf16.mxu0 %v2009
    %2110 = vmatpush1.bf16.msra.mxu0 %v2008
    %2111 = vmatprep.subr.bf16.mxu0 %v2013
    %2112 = vmatpush1.bf16.msra.mxu0 %v2012
    %2113 = vmatprep.subr.bf16.mxu0 %v2017
    %2114 = vmatpush1.bf16.msra.mxu0 %v2016
    %2115 = vmatprep.subr.bf16.mxu0 %v2021
    %2116 = vmatpush1.bf16.msra.mxu0 %v2020
    %2117 = vmatprep.subr.bf16.mxu0 %v2025
    %2118 = vmatpush1.bf16.msra.mxu0 %v2024
    %2119 = vmatprep.subr.bf16.mxu0 %v2029
    %2120 = vmatpush1.bf16.msra.mxu0 %v2028
    %2121 = vmatprep.subr.bf16.mxu0 %v2033
    %2122 = vmatpush1.bf16.msra.mxu0 %v2032
    %2123 = vmatprep.subr.bf16.mxu0 0
    %2124 = vmatpush1.bf16.msra.mxu0 0
    %2125 = vmatprep.subr.bf16.mxu0 0
    %2126 = vmatpush1.bf16.msra.mxu0 0
    %2127 = vmatprep.subr.bf16.mxu0 0
    %2128 = vmatpush1.bf16.msra.mxu0 0
    %2129 = vmatprep.subr.bf16.mxu0 0
    %2130 = vmatpush1.bf16.msra.mxu0 0
    %2131 = vmatprep.subr.bf16.mxu0 0
    %2132 = vmatpush1.bf16.msra.mxu0 0
    %2133 = vmatprep.subr.bf16.mxu0 0
    %2134 = vmatpush1.bf16.msra.mxu0 0
    %2135 = vmatprep.subr.bf16.mxu0 0
    %2136 = vmatpush1.bf16.msra.mxu0 0
    %2137 = vmatprep.subr.bf16.mxu0 0
    %2138 = vmatpush1.bf16.msra.mxu0 0
    %2139 = vmatprep.mubr.bf16.mxu0 0
    %2140 = vmatmul.mubr.bf16.gmra.mrb[0].mxu0 %v1873
    %v2141 = vpop.f32.mrb[0].mxu0
    %v2142 = vadd.f32 0.0, %v2141
    %v2143 = vpop.f32.mrb[0].mxu0
    %v2144 = vadd.f32 0.0, %v2143
    %v2145 = vpop.f32.mrb[0].mxu0
    %v2146 = vpop.f32.mrb[0].mxu0
    %2147 = vdwg.mxu0
    %v2152 = vcombine.low %v2101, %v2103
    %v2153 = vcombine.low %v2142, %v2144
    %v2155 = vunpack.c.l.s4 1966171168
    %v2156 = vunpack.c.0.s8 %v2155
    %v2157 = vlaneseq
    %v2158 = vshrl.u32 %v2157, 7
    %v2159 = vsub.s32 %v2156, %v2158
    %v2160 = vrot.slane %v2152, %v2159
    %v2162 = vunpack.c.l.s4 1966171168
    %v2163 = vunpack.c.0.s8 %v2162
    %v2164 = vlaneseq
    %v2165 = vshrl.u32 %v2164, 7
    %v2166 = vsub.s32 %v2163, %v2165
    %v2167 = vrot.slane %v2153, %v2166
    %v2168 = vcombine.low %v2160, %v2167
    %v2170 = vunpack.c.l.s4 1966171168
    %v2171 = vunpack.c.0.s8 %v2170
    %v2172 = vlaneseq
    %v2173 = vshrl.u32 %v2172, 7
    %v2174 = vsub.s32 %v2171, %v2173
    %v2175 = vrot.slane %v2168, %v2174
    %v2177 = vadd.f32 %v1872, %v2175
    %v2178 = vtanh.pop %v2177
    %v2179 = vmul.f32 %v2178, %v233
    %v2180 = vadd.f32 %v2179, %v234
    %v2182 = vrot.slane %v2180, 1
    %v2184 = vmul.f32 %v2182, %v1864
    %v2185 = vrot.slane %v2180, 3
    %v2187 = vmul.f32 %v2180, %v2185
    %v2188 = vadd.f32 %v2184, %v2187
    %v2189 = vtanh.pop %v2188
    %v2190 = vrot.slane %v2180, 2
    %v2192 = vmul.f32 %v2190, %v2189
    %2193 = vst.msk [vmem:[#allocation3 + $0x6] sm:$0x1] %vm247, %v2192
    %2194 = vst.msk [vmem:[#allocation3 + $0x1] sm:$0x1] %vm249, %v2192
    %s2195 = scalar_lea.vmem [#allocation2], 7
    %v2196 = vld [vmem:[%s2195] ss:$8 sm:$0xf]
    %v2197 = vpack.c.bf16 %v2192, %v2192
    %v2198 = vld [vmem:[#allocation7] sm:$0xff]
    %v2199 = vld [vmem:[#allocation7 + $0x8] sm:$0xff]
    %v2200 = vld [vmem:[#allocation7 + $0x10] sm:$0xff]
    %v2201 = vld [vmem:[#allocation7 + $0x18] sm:$0xff]
    %v2202 = vld [vmem:[#allocation7 + $0x20] sm:$0xff]
    %v2203 = vld [vmem:[#allocation7 + $0x28] sm:$0xff]
    %v2204 = vld [vmem:[#allocation7 + $0x30] sm:$0xff]
    %v2205 = vld [vmem:[#allocation7 + $0x38] sm:$0xff]
    %v2206 = vld [vmem:[#allocation7 + $0x40] sm:$0xff]
    %v2207 = vld [vmem:[#allocation7 + $0x48] sm:$0xff]
    %v2208 = vld [vmem:[#allocation7 + $0x50] sm:$0xff]
    %v2209 = vld [vmem:[#allocation7 + $0x58] sm:$0xff]
    %v2210 = vld [vmem:[#allocation7 + $0x60] sm:$0xff]
    %v2211 = vld [vmem:[#allocation7 + $0x68] sm:$0xff]
    %v2212 = vld [vmem:[#allocation7 + $0x70] sm:$0xff]
    %v2213 = vld [vmem:[#allocation7 + $0x78] sm:$0xff]
    %v2214 = vld [vmem:[#allocation7 + $0x80] sm:$0xff]
    %v2215 = vld [vmem:[#allocation7 + $0x88] sm:$0xff]
    %v2216 = vld [vmem:[#allocation7 + $0x90] sm:$0xff]
    %v2217 = vld [vmem:[#allocation7 + $0x98] sm:$0xff]
    %v2218 = vld [vmem:[#allocation7 + $0xa0] sm:$0xff]
    %v2219 = vld [vmem:[#allocation7 + $0xa8] sm:$0xff]
    %v2220 = vld [vmem:[#allocation7 + $0xb0] sm:$0xff]
    %v2221 = vld [vmem:[#allocation7 + $0xb8] sm:$0xff]
    %v2222 = vld [vmem:[#allocation7 + $0xc0] sm:$0xff]
    %v2223 = vld [vmem:[#allocation7 + $0xc8] sm:$0xff]
    %v2224 = vld [vmem:[#allocation7 + $0xd0] sm:$0xff]
    %v2225 = vld [vmem:[#allocation7 + $0xd8] sm:$0xff]
    %v2226 = vld [vmem:[#allocation7 + $0xe0] sm:$0xff]
    %v2227 = vld [vmem:[#allocation7 + $0xe8] sm:$0xff]
    %v2228 = vld [vmem:[#allocation7 + $0xf0] sm:$0xff]
    %v2229 = vld [vmem:[#allocation7 + $0xf8] sm:$0xff]
    %v2262 = vunpack.c.l.b16 %v2198
    %v2263 = vunpack.c.h.b16 %v2198
    %v2264 = vunpack.c.l.b16 %v2199
    %v2265 = vunpack.c.h.b16 %v2199
    %v2266 = vunpack.c.l.b16 %v2200
    %v2267 = vunpack.c.h.b16 %v2200
    %v2268 = vunpack.c.l.b16 %v2201
    %v2269 = vunpack.c.h.b16 %v2201
    %v2270 = vunpack.c.l.b16 %v2202
    %v2271 = vunpack.c.h.b16 %v2202
    %v2272 = vunpack.c.l.b16 %v2203
    %v2273 = vunpack.c.h.b16 %v2203
    %v2274 = vunpack.c.l.b16 %v2204
    %v2275 = vunpack.c.h.b16 %v2204
    %v2276 = vunpack.c.l.b16 %v2205
    %v2277 = vunpack.c.h.b16 %v2205
    %v2278 = vunpack.c.l.b16 %v2206
    %v2279 = vunpack.c.h.b16 %v2206
    %v2280 = vunpack.c.l.b16 %v2207
    %v2281 = vunpack.c.h.b16 %v2207
    %v2282 = vunpack.c.l.b16 %v2208
    %v2283 = vunpack.c.h.b16 %v2208
    %v2284 = vunpack.c.l.b16 %v2209
    %v2285 = vunpack.c.h.b16 %v2209
    %v2286 = vunpack.c.l.b16 %v2210
    %v2287 = vunpack.c.h.b16 %v2210
    %v2288 = vunpack.c.l.b16 %v2211
    %v2289 = vunpack.c.h.b16 %v2211
    %v2290 = vunpack.c.l.b16 %v2212
    %v2291 = vunpack.c.h.b16 %v2212
    %v2292 = vunpack.c.l.b16 %v2213
    %v2293 = vunpack.c.h.b16 %v2213
    %v2294 = vunpack.c.l.b16 %v2214
    %v2295 = vunpack.c.h.b16 %v2214
    %v2296 = vunpack.c.l.b16 %v2215
    %v2297 = vunpack.c.h.b16 %v2215
    %v2298 = vunpack.c.l.b16 %v2216
    %v2299 = vunpack.c.h.b16 %v2216
    %v2300 = vunpack.c.l.b16 %v2217
    %v2301 = vunpack.c.h.b16 %v2217
    %v2302 = vunpack.c.l.b16 %v2218
    %v2303 = vunpack.c.h.b16 %v2218
    %v2304 = vunpack.c.l.b16 %v2219
    %v2305 = vunpack.c.h.b16 %v2219
    %v2306 = vunpack.c.l.b16 %v2220
    %v2307 = vunpack.c.h.b16 %v2220
    %v2308 = vunpack.c.l.b16 %v2221
    %v2309 = vunpack.c.h.b16 %v2221
    %v2310 = vunpack.c.l.b16 %v2222
    %v2311 = vunpack.c.h.b16 %v2222
    %v2312 = vunpack.c.l.b16 %v2223
    %v2313 = vunpack.c.h.b16 %v2223
    %v2314 = vunpack.c.l.b16 %v2224
    %v2315 = vunpack.c.h.b16 %v2224
    %v2316 = vunpack.c.l.b16 %v2225
    %v2317 = vunpack.c.h.b16 %v2225
    %v2318 = vunpack.c.l.b16 %v2226
    %v2319 = vunpack.c.h.b16 %v2226
    %v2320 = vunpack.c.l.b16 %v2227
    %v2321 = vunpack.c.h.b16 %v2227
    %v2322 = vunpack.c.l.b16 %v2228
    %v2323 = vunpack.c.h.b16 %v2228
    %v2324 = vunpack.c.l.b16 %v2229
    %v2325 = vunpack.c.h.b16 %v2229
    %v2326 = vpack.c.b16 %v2266, %v2262
    %v2327 = vpack.c.b16 %v2267, %v2263
    %v2328 = vpack.c.b16 %v2268, %v2264
    %v2329 = vpack.c.b16 %v2269, %v2265
    %v2330 = vpack.c.b16 %v2274, %v2270
    %v2331 = vpack.c.b16 %v2275, %v2271
    %v2332 = vpack.c.b16 %v2276, %v2272
    %v2333 = vpack.c.b16 %v2277, %v2273
    %v2334 = vpack.c.b16 %v2282, %v2278
    %v2335 = vpack.c.b16 %v2283, %v2279
    %v2336 = vpack.c.b16 %v2284, %v2280
    %v2337 = vpack.c.b16 %v2285, %v2281
    %v2338 = vpack.c.b16 %v2290, %v2286
    %v2339 = vpack.c.b16 %v2291, %v2287
    %v2340 = vpack.c.b16 %v2292, %v2288
    %v2341 = vpack.c.b16 %v2293, %v2289
    %v2342 = vpack.c.b16 %v2298, %v2294
    %v2343 = vpack.c.b16 %v2299, %v2295
    %v2344 = vpack.c.b16 %v2300, %v2296
    %v2345 = vpack.c.b16 %v2301, %v2297
    %v2346 = vpack.c.b16 %v2306, %v2302
    %v2347 = vpack.c.b16 %v2307, %v2303
    %v2348 = vpack.c.b16 %v2308, %v2304
    %v2349 = vpack.c.b16 %v2309, %v2305
    %v2350 = vpack.c.b16 %v2314, %v2310
    %v2351 = vpack.c.b16 %v2315, %v2311
    %v2352 = vpack.c.b16 %v2316, %v2312
    %v2353 = vpack.c.b16 %v2317, %v2313
    %v2354 = vpack.c.b16 %v2322, %v2318
    %v2355 = vpack.c.b16 %v2323, %v2319
    %v2356 = vpack.c.b16 %v2324, %v2320
    %v2357 = vpack.c.b16 %v2325, %v2321
    %2390 = vmatprep.subr.bf16.mxu0 %v2327
    %2391 = vmatpush1.bf16.msra.mxu0 %v2326
    %2392 = vmatprep.subr.bf16.mxu0 %v2331
    %2393 = vmatpush1.bf16.msra.mxu0 %v2330
    %2394 = vmatprep.subr.bf16.mxu0 %v2335
    %2395 = vmatpush1.bf16.msra.mxu0 %v2334
    %2396 = vmatprep.subr.bf16.mxu0 %v2339
    %2397 = vmatpush1.bf16.msra.mxu0 %v2338
    %2398 = vmatprep.subr.bf16.mxu0 %v2343
    %2399 = vmatpush1.bf16.msra.mxu0 %v2342
    %2400 = vmatprep.subr.bf16.mxu0 %v2347
    %2401 = vmatpush1.bf16.msra.mxu0 %v2346
    %2402 = vmatprep.subr.bf16.mxu0 %v2351
    %2403 = vmatpush1.bf16.msra.mxu0 %v2350
    %2404 = vmatprep.subr.bf16.mxu0 %v2355
    %2405 = vmatpush1.bf16.msra.mxu0 %v2354
    %2406 = vmatprep.subr.bf16.mxu0 0
    %2407 = vmatpush1.bf16.msra.mxu0 0
    %2408 = vmatprep.subr.bf16.mxu0 0
    %2409 = vmatpush1.bf16.msra.mxu0 0
    %2410 = vmatprep.subr.bf16.mxu0 0
    %2411 = vmatpush1.bf16.msra.mxu0 0
    %2412 = vmatprep.subr.bf16.mxu0 0
    %2413 = vmatpush1.bf16.msra.mxu0 0
    %2414 = vmatprep.subr.bf16.mxu0 0
    %2415 = vmatpush1.bf16.msra.mxu0 0
    %2416 = vmatprep.subr.bf16.mxu0 0
    %2417 = vmatpush1.bf16.msra.mxu0 0
    %2418 = vmatprep.subr.bf16.mxu0 0
    %2419 = vmatpush1.bf16.msra.mxu0 0
    %2420 = vmatprep.subr.bf16.mxu0 0
    %2421 = vmatpush1.bf16.msra.mxu0 0
    %2422 = vmatprep.mubr.bf16.mxu0 0
    %2423 = vmatmul.mubr.bf16.gmra.mrb[0].mxu0 %v2197
    %v2424 = vpop.f32.mrb[0].mxu0
    %v2425 = vadd.f32 0.0, %v2424
    %v2426 = vpop.f32.mrb[0].mxu0
    %v2427 = vadd.f32 0.0, %v2426
    %v2428 = vpop.f32.mrb[0].mxu0
    %v2429 = vpop.f32.mrb[0].mxu0
    %2430 = vdwg.mxu0
    %2431 = vmatprep.subr.bf16.mxu0 %v2329
    %2432 = vmatpush1.bf16.msra.mxu0 %v2328
    %2433 = vmatprep.subr.bf16.mxu0 %v2333
    %2434 = vmatpush1.bf16.msra.mxu0 %v2332
    %2435 = vmatprep.subr.bf16.mxu0 %v2337
    %2436 = vmatpush1.bf16.msra.mxu0 %v2336
    %2437 = vmatprep.subr.bf16.mxu0 %v2341
    %2438 = vmatpush1.bf16.msra.mxu0 %v2340
    %2439 = vmatprep.subr.bf16.mxu0 %v2345
    %2440 = vmatpush1.bf16.msra.mxu0 %v2344
    %2441 = vmatprep.subr.bf16.mxu0 %v2349
    %2442 = vmatpush1.bf16.msra.mxu0 %v2348
    %2443 = vmatprep.subr.bf16.mxu0 %v2353
    %2444 = vmatpush1.bf16.msra.mxu0 %v2352
    %2445 = vmatprep.subr.bf16.mxu0 %v2357
    %2446 = vmatpush1.bf16.msra.mxu0 %v2356
    %2447 = vmatprep.subr.bf16.mxu0 0
    %2448 = vmatpush1.bf16.msra.mxu0 0
    %2449 = vmatprep.subr.bf16.mxu0 0
    %2450 = vmatpush1.bf16.msra.mxu0 0
    %2451 = vmatprep.subr.bf16.mxu0 0
    %2452 = vmatpush1.bf16.msra.mxu0 0
    %2453 = vmatprep.subr.bf16.mxu0 0
    %2454 = vmatpush1.bf16.msra.mxu0 0
    %2455 = vmatprep.subr.bf16.mxu0 0
    %2456 = vmatpush1.bf16.msra.mxu0 0
    %2457 = vmatprep.subr.bf16.mxu0 0
    %2458 = vmatpush1.bf16.msra.mxu0 0
    %2459 = vmatprep.subr.bf16.mxu0 0
    %2460 = vmatpush1.bf16.msra.mxu0 0
    %2461 = vmatprep.subr.bf16.mxu0 0
    %2462 = vmatpush1.bf16.msra.mxu0 0
    %2463 = vmatprep.mubr.bf16.mxu0 0
    %2464 = vmatmul.mubr.bf16.gmra.mrb[0].mxu0 %v2197
    %v2465 = vpop.f32.mrb[0].mxu0
    %v2466 = vadd.f32 0.0, %v2465
    %v2467 = vpop.f32.mrb[0].mxu0
    %v2468 = vadd.f32 0.0, %v2467
    %v2469 = vpop.f32.mrb[0].mxu0
    %v2470 = vpop.f32.mrb[0].mxu0
    %2471 = vdwg.mxu0
    %v2476 = vcombine.low %v2425, %v2427
    %v2477 = vcombine.low %v2466, %v2468
    %v2479 = vunpack.c.l.s4 1966171168
    %v2480 = vunpack.c.0.s8 %v2479
    %v2481 = vlaneseq
    %v2482 = vshrl.u32 %v2481, 7
    %v2483 = vsub.s32 %v2480, %v2482
    %v2484 = vrot.slane %v2476, %v2483
    %v2486 = vunpack.c.l.s4 1966171168
    %v2487 = vunpack.c.0.s8 %v2486
    %v2488 = vlaneseq
    %v2489 = vshrl.u32 %v2488, 7
    %v2490 = vsub.s32 %v2487, %v2489
    %v2491 = vrot.slane %v2477, %v2490
    %v2492 = vcombine.low %v2484, %v2491
    %v2494 = vunpack.c.l.s4 1966171168
    %v2495 = vunpack.c.0.s8 %v2494
    %v2496 = vlaneseq
    %v2497 = vshrl.u32 %v2496, 7
    %v2498 = vsub.s32 %v2495, %v2497
    %v2499 = vrot.slane %v2492, %v2498
    %v2501 = vadd.f32 %v2196, %v2499
    %v2502 = vtanh.pop %v2501
    %v2503 = vmul.f32 %v2502, %v233
    %v2504 = vadd.f32 %v2503, %v234
    %v2506 = vrot.slane %v2504, 1
    %v2508 = vmul.f32 %v2506, %v2188
    %v2509 = vrot.slane %v2504, 3
    %v2511 = vmul.f32 %v2504, %v2509
    %v2512 = vadd.f32 %v2508, %v2511
    %v2513 = vtanh.pop %v2512
    %v2514 = vrot.slane %v2504, 2
    %v2516 = vmul.f32 %v2514, %v2513
    %2517 = vst.msk [vmem:[#allocation3 + $0x7] sm:$0x1] %vm247, %v2516
    %2518 = vst.msk [vmem:[#allocation3] sm:$0x1] %vm249, %v2516
    %v2519 = vld [vmem:[#allocation3] sm:$0xff]
    %v2520 = vpack.c.bf16 %v2519, %v2519
    %v2521 = vld [vmem:[#allocation9] sm:$0xf]
    %v2522 = vld [vmem:[#allocation9 + $0x4] sm:$0xf]
    %v2523 = vld [vmem:[#allocation9 + $0x8] sm:$0xf]
    %v2524 = vld [vmem:[#allocation9 + $0xc] sm:$0xf]
    %v2525 = vld [vmem:[#allocation9 + $0x10] sm:$0xf]
    %v2526 = vld [vmem:[#allocation9 + $0x14] sm:$0xf]
    %v2527 = vld [vmem:[#allocation9 + $0x18] sm:$0xf]
    %v2528 = vld [vmem:[#allocation9 + $0x1c] sm:$0xf]
    %v2529 = vld [vmem:[#allocation9 + $0x20] sm:$0xf]
    %v2530 = vld [vmem:[#allocation9 + $0x24] sm:$0xf]
    %v2531 = vld [vmem:[#allocation9 + $0x28] sm:$0xf]
    %v2532 = vld [vmem:[#allocation9 + $0x2c] sm:$0xf]
    %v2533 = vld [vmem:[#allocation9 + $0x30] sm:$0xf]
    %v2534 = vld [vmem:[#allocation9 + $0x34] sm:$0xf]
    %v2535 = vld [vmem:[#allocation9 + $0x38] sm:$0xf]
    %v2536 = vld [vmem:[#allocation9 + $0x3c] sm:$0xf]
    %v2537 = vld [vmem:[%s7] sm:$0x1]
    %v2539 = vlaneseq
    %v2540 = vshrl.u32 %v2539, 7
    %v2541 = vsub.s32 0, %v2540
    %v2542 = vrot.slane %v2537, %v2541
    %v2560 = vunpack.c.l.b16 %v2521
    %v2561 = vunpack.c.l.b16 %v2522
    %v2562 = vunpack.c.l.b16 %v2523
    %v2563 = vunpack.c.l.b16 %v2524
    %v2564 = vunpack.c.l.b16 %v2525
    %v2565 = vunpack.c.l.b16 %v2526
    %v2566 = vunpack.c.l.b16 %v2527
    %v2567 = vunpack.c.l.b16 %v2528
    %v2568 = vunpack.c.l.b16 %v2529
    %v2569 = vunpack.c.l.b16 %v2530
    %v2570 = vunpack.c.l.b16 %v2531
    %v2571 = vunpack.c.l.b16 %v2532
    %v2572 = vunpack.c.l.b16 %v2533
    %v2573 = vunpack.c.l.b16 %v2534
    %v2574 = vunpack.c.l.b16 %v2535
    %v2575 = vunpack.c.l.b16 %v2536
    %v2576 = vpack.c.b16 %v2561, %v2560
    %v2577 = vpack.c.b16 %v2563, %v2562
    %v2578 = vpack.c.b16 %v2565, %v2564
    %v2579 = vpack.c.b16 %v2567, %v2566
    %v2580 = vpack.c.b16 %v2569, %v2568
    %v2581 = vpack.c.b16 %v2571, %v2570
    %v2582 = vpack.c.b16 %v2573, %v2572
    %v2583 = vpack.c.b16 %v2575, %v2574
    %2592 = vmatprep.subr.bf16.mxu0 0
    %2593 = vmatpush1.bf16.msra.mxu0 %v2576
    %2594 = vmatprep.subr.bf16.mxu0 0
    %2595 = vmatpush1.bf16.msra.mxu0 %v2577
    %2596 = vmatprep.subr.bf16.mxu0 0
    %2597 = vmatpush1.bf16.msra.mxu0 %v2578
    %2598 = vmatprep.subr.bf16.mxu0 0
    %2599 = vmatpush1.bf16.msra.mxu0 %v2579
    %2600 = vmatprep.subr.bf16.mxu0 0
    %2601 = vmatpush1.bf16.msra.mxu0 %v2580
    %2602 = vmatprep.subr.bf16.mxu0 0
    %2603 = vmatpush1.bf16.msra.mxu0 %v2581
    %2604 = vmatprep.subr.bf16.mxu0 0
    %2605 = vmatpush1.bf16.msra.mxu0 %v2582
    %2606 = vmatprep.subr.bf16.mxu0 0
    %2607 = vmatpush1.bf16.msra.mxu0 %v2583
    %2608 = vmatprep.subr.bf16.mxu0 0
    %2609 = vmatpush1.bf16.msra.mxu0 0
    %2610 = vmatprep.subr.bf16.mxu0 0
    %2611 = vmatpush1.bf16.msra.mxu0 0
    %2612 = vmatprep.subr.bf16.mxu0 0
    %2613 = vmatpush1.bf16.msra.mxu0 0
    %2614 = vmatprep.subr.bf16.mxu0 0
    %2615 = vmatpush1.bf16.msra.mxu0 0
    %2616 = vmatprep.subr.bf16.mxu0 0
    %2617 = vmatpush1.bf16.msra.mxu0 0
    %2618 = vmatprep.subr.bf16.mxu0 0
    %2619 = vmatpush1.bf16.msra.mxu0 0
    %2620 = vmatprep.subr.bf16.mxu0 0
    %2621 = vmatpush1.bf16.msra.mxu0 0
    %2622 = vmatprep.subr.bf16.mxu0 0
    %2623 = vmatpush1.bf16.msra.mxu0 0
    %2624 = vmatprep.mubr.bf16.mxu0 0
    %2625 = vmatmul.mubr.bf16.gmra.mrb[0].mxu0 %v2520
    %v2626 = vpop.f32.mrb[0].mxu0
    %v2627 = vadd.f32 %v2542, %v2626
    %v2628 = vpop.f32.mrb[0].mxu0
    %v2629 = vpop.f32.mrb[0].mxu0
    %v2630 = vpop.f32.mrb[0].mxu0
    %2631 = vdwg.mxu0
    %2632 = vst [vmem:[#allocation10] sm:$0xff] %v2627
    // Predicated region
    $region46: #{bilstm_pallas.1} parent=1 // pred_check
      _
    $region47: #{bilstm_pallas.1} parent=1 // pred_check_branch
      %2634 = sbr.rel (0) target = $region49
    $region48: #{bilstm_pallas.1} parent=1 // pred_region
      %s2636 = ssub.s32 128, 128
      %2637 = vsyncadd [#allocation6], %s2636
      %s2639 = sshll.u32 [#allocation10], 4
      %s2640 = int_to_ptr.vmem [resolvable:$true] %s2639
      %2642 = dma.vmem_to_hbm [thread:$0]  %s2640, 128, %s8, [#allocation6]
    $region49: #{bilstm_pallas.1} parent=1 // pred_fallthru
      _
    // Predicated region
    $region50: #{bilstm_pallas.1} parent=1 // pred_check
      _
    $region51: #{bilstm_pallas.1} parent=1 // pred_check_branch
      %2644 = sbr.rel (0) target = $region53
    $region52: #{bilstm_pallas.1} parent=1 // pred_region
      %2645 = dma.done [#allocation6], 128
    $region53: #{bilstm_pallas.1} parent=1 // pred_fallthru
      _
    %2646 = vsyncpa [#allocation5], 1
    %2647 = vsyncpa [#allocation8], 1
    %2648 = vsyncpa [#allocation6], 1

</llo_original>
